<compile_context>
chip_gen: v5e
topology: v5e:2x2
jax: 0.10.0
libtpu: 0.0.40
codegen_flags: <defaults>
</compile_context>

<pallas_src>
import functools

import jax
import jax.numpy as jnp
from jax.experimental import pallas as pl
from jax.experimental.pallas import tpu as pltpu


def _round_up(x, m):
    return (x + m - 1) // m * m


def _cdiv(a, b):
    return (a + b - 1) // b


# ---------------------------------------------------------------------------
# Kernels
# ---------------------------------------------------------------------------

def first_stats_kernel(x_ref, w_ref, sum_ref, sumsq_ref, *,
                       kt, t_out, t_blk, c_in_pad, c_out_pad):
    """Layer-0 statistics pass.

    x_ref:   ((t_out + kt - 1) * c_in_pad, tile_m) bf16   padded input slab tile
    w_ref:   (t_blk*c_out_pad, (t_blk+kt-1)*c_in_pad) bf16 block-banded weight
    sum_ref, sumsq_ref: (t_out*c_out_pad, 1) f32          per-tile partial stats
    Padded M columns / padded channels of the input are exact zeros, so their
    conv outputs are zero and contribute nothing to the sums (no masking needed).
    """
    w = w_ref[...]
    n_blk = t_out // t_blk
    for tb in range(n_blk):
        r0 = tb * t_blk * c_in_pad
        xs = x_ref[r0:r0 + (t_blk + kt - 1) * c_in_pad, :]
        y = jnp.dot(w, xs, preferred_element_type=jnp.float32)
        s0 = tb * t_blk * c_out_pad
        s1 = s0 + t_blk * c_out_pad
        sum_ref[s0:s1, :] = jnp.sum(y, axis=1, keepdims=True)
        sumsq_ref[s0:s1, :] = jnp.sum(y * y, axis=1, keepdims=True)


def apply_layer_kernel(x_ref, w_ref, scale_ref, shift_ref, *rest,
                       kt, pad, t_out, t_blk, c_in_pad, c_out_pad,
                       t_blk_next, c_next_pad, has_next,
                       tile_m, m_true, needs_mask):
    """Conv + BN-affine + LeakyReLU apply pass, with fused next-layer stats.

    x_ref:     ((t_out + 2*pad) * c_in_pad, tile_m)  bf16
    w_ref:     (t_blk*c_out_pad, (t_blk+kt-1)*c_in_pad) bf16 banded weight
    scale_ref, shift_ref: (t_blk*c_out_pad, 1) f32   per-channel BN affine,
                                                     tiled over the frame block
    rest (has_next):  wn_ref (next-layer banded weight), o_ref, nsum_ref, nsumsq_ref
    rest (!has_next): o_ref
    """
    if has_next:
        wn_ref, o_ref, nsum_ref, nsumsq_ref = rest
    else:
        (o_ref,) = rest

    m_idx = pl.program_id(0)
    n_blk = t_out // t_blk

    w = w_ref[...]
    scale = scale_ref[...]
    shift = shift_ref[...]

    if needs_mask:
        col = m_idx * tile_m + jax.lax.broadcasted_iota(jnp.int32, (1, tile_m), 1)
        lane_ok = col < m_true

    # Zero the temporal padding rows so this slab feeds the next layer (and the
    # fused next-layer conv below) directly, with no host-side padding.
    if pad > 0:
        zrows = jnp.zeros((pad * c_out_pad, tile_m), o_ref.dtype)
        o_ref[0:pad * c_out_pad, :] = zrows
        o_ref[(pad + t_out) * c_out_pad:(t_out + 2 * pad) * c_out_pad, :] = zrows

    for tb in range(n_blk):
        r0 = tb * t_blk * c_in_pad
        xs = x_ref[r0:r0 + (t_blk + kt - 1) * c_in_pad, :]
        y = jnp.dot(w, xs, preferred_element_type=jnp.float32)   # f32 accum
        z = y * scale + shift                                    # BN affine
        z = jnp.where(z >= 0, z, 0.01 * z)                       # LeakyReLU(0.01)
        if needs_mask:
            # Keep padded M columns exactly zero (only the last tile is partial;
            # on full tiles this select is a cheap no-op VPU pass).
            z = jnp.where(lane_ok, z, 0.0)
        o0 = (pad + tb * t_blk) * c_out_pad
        o_ref[o0:o0 + t_blk * c_out_pad, :] = z.astype(o_ref.dtype)

    if has_next:
        # Fused next-layer statistics: re-read the just-written bf16 output tile
        # (still in VMEM, including the zeroed pad rows / masked columns) and run
        # the next layer's banded conv, emitting per-tile partial sum / sumsq.
        wn = wn_ref[...]
        n_blk2 = t_out // t_blk_next
        for tb in range(n_blk2):
            r0 = tb * t_blk_next * c_out_pad
            xs2 = o_ref[r0:r0 + (t_blk_next + kt - 1) * c_out_pad, :]
            y2 = jnp.dot(wn, xs2, preferred_element_type=jnp.float32)
            s0 = tb * t_blk_next * c_next_pad
            s1 = s0 + t_blk_next * c_next_pad
            nsum_ref[s0:s1, :] = jnp.sum(y2, axis=1, keepdims=True)
            nsumsq_ref[s0:s1, :] = jnp.sum(y2 * y2, axis=1, keepdims=True)


# ---------------------------------------------------------------------------
# Host-side helpers
# ---------------------------------------------------------------------------

def _choose_tile_m(m_true, rows_total, max_tile_m, budget_bytes=24 << 20):
    """Pick the largest lane tile that keeps double-buffered in+out blocks within
    the VMEM budget (v7x-safe), then balance tiles to limit last-tile waste."""
    m_ceil = _round_up(max(m_true, 1), 128)
    bytes_per_col = rows_total * 2 * 2          # bf16, 2x double-buffered blocks
    cap = max(128, (budget_bytes // bytes_per_col) // 128 * 128)
    tile = min(max(128, (max_tile_m // 128) * 128), cap, m_ceil)
    n_m = _cdiv(m_ceil, tile)
    tile = _round_up(_cdiv(m_true, n_m), 128)   # balance -> less padding waste
    return tile, n_m * tile, n_m


def _choose_t_blk(t_out, c_out_pad, c_in_pad, kt,
                  target_rows=256, max_w_bytes=2 << 20):
    """Frame-block size for the banded matmul: largest divisor of t_out keeping
    the LHS row count <= ~256 and the banded weight small."""
    best = 1
    for d in range(1, t_out + 1):
        if t_out % d:
            continue
        rows = d * c_out_pad
        cols = (d + kt - 1) * c_in_pad
        if rows <= target_rows and rows * cols * 2 <= max_w_bytes:
            best = d
    return best


def _build_band(wgt, kt, c_in_pad, c_out_pad, t_blk, dtype):
    """(kt, C_out, C_in) -> block-banded (t_blk*C_out_pad, (t_blk+kt-1)*C_in_pad).

    Output row (tloc, co) contracts against local padded-input frames
    tloc..tloc+kt-1 (cross-correlation, matching Conv3d).  Padded channels are
    zero rows/columns, so padded outputs come out exactly 0.
    """
    _, c_out, c_in = wgt.shape
    wp = jnp.pad(wgt, ((0, 0), (0, c_out_pad - c_out), (0, c_in_pad - c_in)))
    wp = jnp.transpose(wp, (1, 0, 2))                   # (c_out_pad, kt, c_in_pad)
    band = jnp.zeros((t_blk, c_out_pad, t_blk + kt - 1, c_in_pad), wgt.dtype)
    for tloc in range(t_blk):
        band = band.at[tloc, :, tloc:tloc + kt, :].set(wp)
    return band.reshape(t_blk * c_out_pad,
                        (t_blk + kt - 1) * c_in_pad).astype(dtype)


def _bn_affine(sum_out, sumsq_out, gamma, beta, t_out, c_out, c_out_pad,
               m_true, eps, t_blk):
    """Reduce per-tile partial stats (f32) and build the per-channel BN affine,
    tiled over the frame block: scale/shift of shape (t_blk*c_out_pad, 1)."""
    s = jnp.sum(sum_out, axis=0).reshape(t_out, c_out_pad).sum(axis=0)
    ss = jnp.sum(sumsq_out, axis=0).reshape(t_out, c_out_pad).sum(axis=0)
    count = jnp.float32(t_out * m_true)
    mean = s / count
    # One-pass variance; clamped at 0 (see header note on cancellation).
    var = jnp.maximum(ss / count - mean * mean, 0.0)
    g = jnp.pad(gamma.reshape(-1), (0, c_out_pad - c_out))
    b = jnp.pad(beta.reshape(-1), (0, c_out_pad - c_out))
    scale = g * jax.lax.rsqrt(var + jnp.float32(eps))
    shift = b - mean * scale
    scale_big = jnp.tile(scale, t_blk).reshape(t_blk * c_out_pad, 1)
    shift_big = jnp.tile(shift, t_blk).reshape(t_blk * c_out_pad, 1)
    return scale_big.astype(jnp.float32), shift_big.astype(jnp.float32)


def _stats_call(x_slab, w_band, *, kt, t_out, t_blk, c_in_pad, c_out_pad,
                tile_m, n_m, vmem_limit):
    rows_in = (t_out + 2 * (kt // 2)) * c_in_pad
    r_stats = t_out * c_out_pad
    kernel = functools.partial(first_stats_kernel, kt=kt, t_out=t_out,
                               t_blk=t_blk, c_in_pad=c_in_pad,
                               c_out_pad=c_out_pad)
    stats_struct = jax.ShapeDtypeStruct((n_m, r_stats, 1), jnp.float32)
    stats_spec = pl.BlockSpec((None, r_stats, 1), lambda m: (m, 0, 0))
    return pl.pallas_call(
        kernel,
        out_shape=(stats_struct, stats_struct),
        grid=(n_m,),
        in_specs=[pl.BlockSpec((rows_in, tile_m), lambda m: (0, m)),
                  pl.BlockSpec(w_band.shape, lambda m: (0, 0))],
        out_specs=(stats_spec, stats_spec),
        compiler_params=pltpu.CompilerParams(
            dimension_semantics=("parallel",),
            vmem_limit_bytes=vmem_limit),
    )(x_slab, w_band)


def _apply_call(x_slab, w_band, scale, shift, w_next_band, *,
                kt, t_out, t_blk, c_in_pad, c_out_pad,
                t_blk_next, c_next_pad, tile_m, n_m, m_pad, m_true,
                act_dtype, vmem_limit):
    pad = kt // 2
    t_padded = t_out + 2 * pad
    rows_in = t_padded * c_in_pad
    rows_out = t_padded * c_out_pad
    has_next = w_next_band is not None
    needs_mask = (m_pad != m_true)
    kernel = functools.partial(
        apply_layer_kernel, kt=kt, pad=pad, t_out=t_out, t_blk=t_blk,
        c_in_pad=c_in_pad, c_out_pad=c_out_pad, t_blk_next=t_blk_next,
        c_next_pad=c_next_pad, has_next=has_next, tile_m=tile_m,
        m_true=m_true, needs_mask=needs_mask)

    in_specs = [pl.BlockSpec((rows_in, tile_m), lambda m: (0, m)),
                pl.BlockSpec(w_band.shape, lambda m: (0, 0)),
                pl.BlockSpec(scale.shape, lambda m: (0, 0)),
                pl.BlockSpec(shift.shape, lambda m: (0, 0))]
    args = [x_slab, w_band, scale, shift]
    out_shapes = [jax.ShapeDtypeStruct((rows_out, m_pad), act_dtype)]
    out_specs = [pl.BlockSpec((rows_out, tile_m), lambda m: (0, m))]
    if has_next:
        in_specs.append(pl.BlockSpec(w_next_band.shape, lambda m: (0, 0)))
        args.append(w_next_band)
        r_stats = t_out * c_next_pad
        stats_struct = jax.ShapeDtypeStruct((n_m, r_stats, 1), jnp.float32)
        stats_spec = pl.BlockSpec((None, r_stats, 1), lambda m: (m, 0, 0))
        out_shapes += [stats_struct, stats_struct]
        out_specs += [stats_spec, stats_spec]

    return pl.pallas_call(
        kernel,
        out_shape=tuple(out_shapes),
        grid=(n_m,),
        in_specs=in_specs,
        out_specs=tuple(out_specs),
        compiler_params=pltpu.CompilerParams(
            dimension_semantics=("parallel",),
            vmem_limit_bytes=vmem_limit),
    )(*args)


# ---------------------------------------------------------------------------
# Forward pass
# ---------------------------------------------------------------------------

def temporal_block_forward(x, params, *, kt, max_tile_m=8192, eps=1e-5,
                           act_dtype=jnp.bfloat16):
    """x: (N, C, T, H, W) float32 (NCDHW like PyTorch).  Returns NCDHW float32."""
    assert kt % 2 == 1, "odd temporal kernel expected (padding = kt//2)"
    assert len(params) >= 1
    n, c, t, h, w = x.shape
    pad = kt // 2
    t_pad = t + 2 * pad
    m_true = n * h * w

    # Per-layer (c_in, c_in_pad, c_out, c_out_pad).
    dims = []
    ci, ci_p = c, _round_up(c, 8)
    for (wgt, _, _) in params:
        co = wgt.shape[1]
        co_p = _round_up(co, 8)
        dims.append((ci, ci_p, co, co_p))
        ci, ci_p = co, co_p

    # Lane tile: as large as the VMEM budget allows (v7x-safe), balanced vs m_true.
    max_rows = max(t_pad * (d[1] + d[3]) for d in dims)
    tile_m, m_pad, n_m = _choose_tile_m(m_true, max_rows, max_tile_m)
    # Scoped-VMEM request: above v5e's 16 MiB default, well under v7x's 64 MiB.
    need = max_rows * tile_m * 2 * 2
    vmem_limit = int(max(32 << 20, min(48 << 20, need + (16 << 20))))

    # One-time repack: NCDHW -> (T_pad*C_pad, M_pad).  Cast to bf16 FIRST so the
    # transpose/pad only moves 2 bytes/elem.
    ci0_p = dims[0][1]
    xk = x.astype(act_dtype)
    xk = jnp.transpose(xk, (2, 1, 0, 3, 4)).reshape(t, c, m_true)
    xk = jnp.pad(xk, ((pad, pad), (0, ci0_p - c), (0, m_pad - m_true)))
    xk = xk.reshape(t_pad * ci0_p, m_pad)

    # Banded weights + frame-block sizes per layer.
    t_blks, bands = [], []
    for (wgt, _, _), (_, ci_p, _, co_p) in zip(params, dims):
        tb = _choose_t_blk(t, co_p, ci_p, kt)
        t_blks.append(tb)
        bands.append(_build_band(wgt, kt, ci_p, co_p, tb, act_dtype))

    # Layer-0 statistics pass (the only extra full read of an activation slab;
    # every later layer gets its stats fused into the previous apply pass).
    _, ci_p0, _, co_p0 = dims[0]
    sum_cur, sumsq_cur = _stats_call(
        xk, bands[0], kt=kt, t_out=t, t_blk=t_blks[0], c_in_pad=ci_p0,
        c_out_pad=co_p0, tile_m=tile_m, n_m=n_m, vmem_limit=vmem_limit)

    for li, ((_, gamma, beta), (_, ci_p, co, co_p)) in enumerate(zip(params, dims)):
        t_blk = t_blks[li]
        scale, shift = _bn_affine(sum_cur, sumsq_cur, gamma, beta, t, co, co_p,
                                  m_true, eps, t_blk)
        has_next = li + 1 < len(params)
        wnext = bands[li + 1] if has_next else None
        tbn = t_blks[li + 1] if has_next else 1
        cnp = dims[li + 1][3] if has_next else 8
        outs = _apply_call(
            xk, bands[li], scale, shift, wnext,
            kt=kt, t_out=t, t_blk=t_blk, c_in_pad=ci_p, c_out_pad=co_p,
            t_blk_next=tbn, c_next_pad=cnp, tile_m=tile_m, n_m=n_m,
            m_pad=m_pad, m_true=m_true, act_dtype=act_dtype,
            vmem_limit=vmem_limit)
        if has_next:
            xk, sum_cur, sumsq_cur = outs
        else:
            xk = outs[0]

    co, co_p = dims[-1][2], dims[-1][3]
    y = xk.reshape(t_pad, co_p, m_pad)[pad:pad + t, :co, :m_true]
    y = y.reshape(t, co, n, h, w)
    return jnp.transpose(y, (2, 1, 0, 3, 4)).astype(jnp.float32)


# ---------------------------------------------------------------------------
# Parameters + pure-JAX reference
# ---------------------------------------------------------------------------

def init_params(key, in_channels, out_channels, num_layers, kt):
    """Synthetic parameters: conv weight (kt, Co, Ci), BN gamma/beta (Co, 1)."""
    params = []
    c_in = in_channels
    intermed = out_channels
    for i in range(num_layers):
        intermed *= 2
        if i == num_layers - 1:
            intermed = out_channels
        key, k1, k2, k3 = jax.random.split(key, 4)
        wgt = 0.1 * jax.random.normal(k1, (kt, intermed, c_in), jnp.float32)
        gamma = 1.0 + 0.1 * jax.random.normal(k2, (intermed, 1), jnp.float32)
        beta = 0.1 * jax.random.normal(k3, (intermed, 1), jnp.float32)
        params.append((wgt, gamma, beta))
        c_in = intermed
    return params


def reference_forward(x, params, *, kt, eps=1e-5):
    """Pure-JAX f32 reference mirroring the PyTorch training-mode forward."""
    pad = kt // 2
    for wgt, gamma, beta in params:
        w5 = jnp.transpose(wgt, (1, 2, 0))[:, :, :, None, None]
        y = jax.lax.conv_general_dilated(
            x, w5, window_strides=(1, 1, 1),
            padding=((pad, pad), (0, 0), (0, 0)),
            dimension_numbers=('NCDHW', 'OIDHW', 'NCDHW'))
        mean = jnp.mean(y, axis=(0, 2, 3, 4), keepdims=True)
        var = jnp.mean((y - mean) ** 2, axis=(0, 2, 3, 4), keepdims=True)
        z = (y - mean) * jax.lax.rsqrt(var + eps)
        z = z * gamma.reshape(1, -1, 1, 1, 1) + beta.reshape(1, -1, 1, 1, 1)
        x = jnp.where(z >= 0, z, 0.01 * z)
    return x


if __name__ == "__main__":
    # Small shapes consistent with the module: input (N, C, T, H, W).
    # W=15 makes M = N*H*W = 480 non-128-aligned, exercising the partial-tile
    # masking path; max_tile_m=256 forces a 2-tile "parallel" M grid.
    N, C, T, H, W = 2, 4, 8, 16, 15
    num_layers = 2
    out_channels = 4
    kernel_size = 3      # temporal kernel (kt, 1, 1)
    # dropout_rate = 0.0 -> learning_without_dropout path (Dropout is identity)

    key = jax.random.PRNGKey(0)
    key, kx = jax.random.split(key)
    x = jax.random.normal(kx, (N, C, T, H, W), jnp.float32)
    params = init_params(key, in_channels=C, out_channels=out_channels,
                         num_layers=num_layers, kt=kernel_size)

    fwd = jax.jit(functools.partial(temporal_block_forward, kt=kernel_size,
                                    max_tile_m=256))
    out = jax.block_until_ready(fwd(x, params))

    ref = jax.block_until_ready(reference_forward(x, params, kt=kernel_size))
    assert out.shape == (N, out_channels, T, H, W), out.shape
    # bf16 activations/weights at the HBM/MXU boundary (f32 accumulation + BN),
    # so tolerance vs the f32 PyTorch-semantics reference is loosened.
    assert jnp.allclose(out, ref, atol=1e-1, rtol=5e-2), \
        float(jnp.max(jnp.abs(out - ref)))
    print("KERNEL_OK")
</pallas_src>

<mosaic_0001>
module attributes {stable_mosaic.version = 11 : i64} {
  func.func @first_stats_kernel(%arg0: i32, %arg1: memref<80x256xbf16, #tpu.memory_space<vmem>>, %arg2: memref<64x80xbf16, #tpu.memory_space<vmem>>, %arg3: memref<1x64x1xf32, #tpu.memory_space<vmem>>, %arg4: memref<1x64x1xf32, #tpu.memory_space<vmem>>) attributes {dimension_semantics = [#tpu.dimension_semantics<parallel>], iteration_bounds = array<i64: 2>, scalar_prefetch = 0 : i64, scratch_operands = 0 : i64, tpu.core_type = #tpu.core_type<tc>, window_params = [{transform_indices = @transform_0, window_bounds = array<i64: 80, 256>}, {pipeline_mode = #tpu.pipeline_mode<synchronous>, transform_indices = @transform_1, window_bounds = array<i64: 64, 80>}, {transform_indices = @transform_2, window_bounds = array<i64: 1, 64, 1>}, {transform_indices = @transform_3, window_bounds = array<i64: 1, 64, 1>}]} {
    %c0 = arith.constant 0 : index
    %c0_0 = arith.constant 0 : index
    %0 = vector.load %arg2[%c0, %c0_0] : memref<64x80xbf16, #tpu.memory_space<vmem>>, vector<64x80xbf16>
    %c0_1 = arith.constant 0 : index
    %c0_2 = arith.constant 0 : index
    %1 = vector.load %arg1[%c0_1, %c0_2] : memref<80x256xbf16, #tpu.memory_space<vmem>>, vector<80x256xbf16>
    %cst = arith.constant dense<0.000000e+00> : vector<64x256xf32>
    %2 = tpu.matmul %0, %1, %cst {dimension_numbers = #tpu.dot_dimension_numbers<[1], [0], [0], [1], [0, 0, 1, 1], [], []>} : vector<64x80xbf16>, vector<80x256xbf16>, vector<64x256xf32> -> vector<64x256xf32>
    %cst_3 = arith.constant dense<0.000000e+00> : vector<64xf32>
    %3 = vector.multi_reduction <add>, %2, %cst_3 [1] : vector<64x256xf32> to vector<64xf32>
    %4 = vector.shape_cast %3 : vector<64xf32> to vector<64x1xf32>
    %c0_4 = arith.constant 0 : index
    %c0_5 = arith.constant 0 : index
    %c0_6 = arith.constant 0 : index
    %5 = vector.load %arg3[%c0_4, %c0_5, %c0_6] : memref<1x64x1xf32, #tpu.memory_space<vmem>>, vector<1x64x1xf32>
    %6 = vector.shape_cast %5 : vector<1x64x1xf32> to vector<64x1xf32>
    %7 = vector.shape_cast %4 : vector<64x1xf32> to vector<1x64x1xf32>
    tpu.vector_store %arg3[%c0_4, %c0_5, %c0_6], %7 {strides = array<i32>} : memref<1x64x1xf32, #tpu.memory_space<vmem>>, vector<1x64x1xf32>,
    %8 = arith.mulf %2, %2 : vector<64x256xf32>
    %cst_7 = arith.constant dense<0.000000e+00> : vector<64xf32>
    %9 = vector.multi_reduction <add>, %8, %cst_7 [1] : vector<64x256xf32> to vector<64xf32>
    %10 = vector.shape_cast %9 : vector<64xf32> to vector<64x1xf32>
    %c0_8 = arith.constant 0 : index
    %c0_9 = arith.constant 0 : index
    %c0_10 = arith.constant 0 : index
    %11 = vector.load %arg4[%c0_8, %c0_9, %c0_10] : memref<1x64x1xf32, #tpu.memory_space<vmem>>, vector<1x64x1xf32>
    %12 = vector.shape_cast %11 : vector<1x64x1xf32> to vector<64x1xf32>
    %13 = vector.shape_cast %10 : vector<64x1xf32> to vector<1x64x1xf32>
    tpu.vector_store %arg4[%c0_8, %c0_9, %c0_10], %13 {strides = array<i32>} : memref<1x64x1xf32, #tpu.memory_space<vmem>>, vector<1x64x1xf32>,
    return
  }
  func.func @transform_0(%arg0: i32) -> (i32, i32) {
    %c0_i32 = arith.constant 0 : i32
    %c0_i32_0 = arith.constant 0 : i32
    return %c0_i32, %arg0 : i32, i32
  }
  func.func @transform_1(%arg0: i32) -> (i32, i32) {
    %c0_i32 = arith.constant 0 : i32
    %c0_i32_0 = arith.constant 0 : i32
    %c0_i32_1 = arith.constant 0 : i32
    return %c0_i32, %c0_i32_0 : i32, i32
  }
  func.func @transform_2(%arg0: i32) -> (i32, i32, i32) {
    %c0_i32 = arith.constant 0 : i32
    %c0_i32_0 = arith.constant 0 : i32
    %c0_i32_1 = arith.constant 0 : i32
    return %arg0, %c0_i32, %c0_i32_0 : i32, i32, i32
  }
  func.func @transform_3(%arg0: i32) -> (i32, i32, i32) {
    %c0_i32 = arith.constant 0 : i32
    %c0_i32_0 = arith.constant 0 : i32
    %c0_i32_1 = arith.constant 0 : i32
    return %arg0, %c0_i32, %c0_i32_0 : i32, i32, i32
  }
}

module attributes {stable_mosaic.version = 11 : i64} {
  func.func @apply_layer_kernel(%arg0: i32, %arg1: memref<80x256xbf16, #tpu.memory_space<vmem>>, %arg2: memref<64x80xbf16, #tpu.memory_space<vmem>>, %arg3: memref<64x1xf32, #tpu.memory_space<vmem>>, %arg4: memref<64x1xf32, #tpu.memory_space<vmem>>, %arg5: memref<64x80xbf16, #tpu.memory_space<vmem>>, %arg6: memref<80x256xbf16, #tpu.memory_space<vmem>>, %arg7: memref<1x64x1xf32, #tpu.memory_space<vmem>>, %arg8: memref<1x64x1xf32, #tpu.memory_space<vmem>>) attributes {dimension_semantics = [#tpu.dimension_semantics<parallel>], iteration_bounds = array<i64: 2>, scalar_prefetch = 0 : i64, scratch_operands = 0 : i64, tpu.core_type = #tpu.core_type<tc>, window_params = [{transform_indices = @transform_0, window_bounds = array<i64: 80, 256>}, {pipeline_mode = #tpu.pipeline_mode<synchronous>, transform_indices = @transform_1, window_bounds = array<i64: 64, 80>}, {pipeline_mode = #tpu.pipeline_mode<synchronous>, transform_indices = @transform_2, window_bounds = array<i64: 64, 1>}, {pipeline_mode = #tpu.pipeline_mode<synchronous>, transform_indices = @transform_3, window_bounds = array<i64: 64, 1>}, {pipeline_mode = #tpu.pipeline_mode<synchronous>, transform_indices = @transform_4, window_bounds = array<i64: 64, 80>}, {transform_indices = @transform_5, window_bounds = array<i64: 80, 256>}, {transform_indices = @transform_6, window_bounds = array<i64: 1, 64, 1>}, {transform_indices = @transform_7, window_bounds = array<i64: 1, 64, 1>}]} {
    %c0 = arith.constant 0 : index
    %c0_0 = arith.constant 0 : index
    %0 = vector.load %arg2[%c0, %c0_0] : memref<64x80xbf16, #tpu.memory_space<vmem>>, vector<64x80xbf16>
    %c0_1 = arith.constant 0 : index
    %c0_2 = arith.constant 0 : index
    %1 = vector.load %arg3[%c0_1, %c0_2] : memref<64x1xf32, #tpu.memory_space<vmem>>, vector<64x1xf32>
    %c0_3 = arith.constant 0 : index
    %c0_4 = arith.constant 0 : index
    %2 = vector.load %arg4[%c0_3, %c0_4] : memref<64x1xf32, #tpu.memory_space<vmem>>, vector<64x1xf32>
    %c256_i32 = arith.constant 256 : i32
    %3 = arith.muli %arg0, %c256_i32 : i32
    %4 = tpu.iota {dimensions = array<i32: 1>} : vector<1x256xi32>
    %5 = vector.broadcast %3 : i32 to vector<1x256xi32>
    %6 = arith.addi %5, %4 : vector<1x256xi32>
    %c480_i32 = arith.constant 480 : i32
    %7 = vector.broadcast %c480_i32 : i32 to vector<1x256xi32>
    %8 = arith.cmpi slt, %6, %7 : vector<1x256xi32>
    %cst = arith.constant 0.000000e+00 : bf16
    %9 = vector.broadcast %cst : bf16 to vector<8x256xbf16>
    %c0_5 = arith.constant 0 : index
    %c0_6 = arith.constant 0 : index
    %10 = vector.load %arg6[%c0_5, %c0_6] : memref<80x256xbf16, #tpu.memory_space<vmem>>, vector<8x256xbf16>
    tpu.vector_store %arg6[%c0_5, %c0_6], %9 {strides = array<i32>} : memref<80x256xbf16, #tpu.memory_space<vmem>>, vector<8x256xbf16>,
    %c72 = arith.constant 72 : index
    %c0_7 = arith.constant 0 : index
    %11 = vector.load %arg6[%c72, %c0_7] : memref<80x256xbf16, #tpu.memory_space<vmem>>, vector<8x256xbf16>
    tpu.vector_store %arg6[%c72, %c0_7], %9 {strides = array<i32>} : memref<80x256xbf16, #tpu.memory_space<vmem>>, vector<8x256xbf16>,
    %c0_8 = arith.constant 0 : index
    %c0_9 = arith.constant 0 : index
    %12 = vector.load %arg1[%c0_8, %c0_9] : memref<80x256xbf16, #tpu.memory_space<vmem>>, vector<80x256xbf16>
    %cst_10 = arith.constant dense<0.000000e+00> : vector<64x256xf32>
    %13 = tpu.matmul %0, %12, %cst_10 {dimension_numbers = #tpu.dot_dimension_numbers<[1], [0], [0], [1], [0, 0, 1, 1], [], []>} : vector<64x80xbf16>, vector<80x256xbf16>, vector<64x256xf32> -> vector<64x256xf32>
    %14 = vector.broadcast %1 : vector<64x1xf32> to vector<64x256xf32>
    %15 = arith.mulf %13, %14 : vector<64x256xf32>
    %16 = vector.broadcast %2 : vector<64x1xf32> to vector<64x256xf32>
    %17 = arith.addf %15, %16 : vector<64x256xf32>
    %cst_11 = arith.constant 0.000000e+00 : f32
    %18 = vector.broadcast %cst_11 : f32 to vector<64x256xf32>
    %19 = arith.cmpf oge, %17, %18 : vector<64x256xf32>
    %cst_12 = arith.constant 0.00999999977 : f32
    %20 = vector.broadcast %cst_12 : f32 to vector<64x256xf32>
    %21 = arith.mulf %20, %17 : vector<64x256xf32>
    %22 = arith.select %19, %17, %21 : vector<64x256xi1>, vector<64x256xf32>
    %cst_13 = arith.constant 0.000000e+00 : f32
    %23 = vector.shape_cast %8 : vector<1x256xi1> to vector<1x256xi1>
    %24 = vector.broadcast %23 : vector<1x256xi1> to vector<64x256xi1>
    %25 = vector.broadcast %cst_13 : f32 to vector<64x256xf32>
    %26 = arith.select %24, %22, %25 : vector<64x256xi1>, vector<64x256xf32>
    %27 = arith.truncf %26 : vector<64x256xf32> to vector<64x256xbf16>
    %c8 = arith.constant 8 : index
    %c0_14 = arith.constant 0 : index
    %28 = vector.load %arg6[%c8, %c0_14] : memref<80x256xbf16, #tpu.memory_space<vmem>>, vector<64x256xbf16>
    tpu.vector_store %arg6[%c8, %c0_14], %27 {strides = array<i32>} : memref<80x256xbf16, #tpu.memory_space<vmem>>, vector<64x256xbf16>,
    %c0_15 = arith.constant 0 : index
    %c0_16 = arith.constant 0 : index
    %29 = vector.load %arg5[%c0_15, %c0_16] : memref<64x80xbf16, #tpu.memory_space<vmem>>, vector<64x80xbf16>
    %c0_17 = arith.constant 0 : index
    %c0_18 = arith.constant 0 : index
    %30 = vector.load %arg6[%c0_17, %c0_18] : memref<80x256xbf16, #tpu.memory_space<vmem>>, vector<80x256xbf16>
    %cst_19 = arith.constant dense<0.000000e+00> : vector<64x256xf32>
    %31 = tpu.matmul %29, %30, %cst_19 {dimension_numbers = #tpu.dot_dimension_numbers<[1], [0], [0], [1], [0, 0, 1, 1], [], []>} : vector<64x80xbf16>, vector<80x256xbf16>, vector<64x256xf32> -> vector<64x256xf32>
    %cst_20 = arith.constant dense<0.000000e+00> : vector<64xf32>
    %32 = vector.multi_reduction <add>, %31, %cst_20 [1] : vector<64x256xf32> to vector<64xf32>
    %33 = vector.shape_cast %32 : vector<64xf32> to vector<64x1xf32>
    %c0_21 = arith.constant 0 : index
    %c0_22 = arith.constant 0 : index
    %c0_23 = arith.constant 0 : index
    %34 = vector.load %arg7[%c0_21, %c0_22, %c0_23] : memref<1x64x1xf32, #tpu.memory_space<vmem>>, vector<1x64x1xf32>
    %35 = vector.shape_cast %34 : vector<1x64x1xf32> to vector<64x1xf32>
    %36 = vector.shape_cast %33 : vector<64x1xf32> to vector<1x64x1xf32>
    tpu.vector_store %arg7[%c0_21, %c0_22, %c0_23], %36 {strides = array<i32>} : memref<1x64x1xf32, #tpu.memory_space<vmem>>, vector<1x64x1xf32>,
    %37 = arith.mulf %31, %31 : vector<64x256xf32>
    %cst_24 = arith.constant dense<0.000000e+00> : vector<64xf32>
    %38 = vector.multi_reduction <add>, %37, %cst_24 [1] : vector<64x256xf32> to vector<64xf32>
    %39 = vector.shape_cast %38 : vector<64xf32> to vector<64x1xf32>
    %c0_25 = arith.constant 0 : index
    %c0_26 = arith.constant 0 : index
    %c0_27 = arith.constant 0 : index
    %40 = vector.load %arg8[%c0_25, %c0_26, %c0_27] : memref<1x64x1xf32, #tpu.memory_space<vmem>>, vector<1x64x1xf32>
    %41 = vector.shape_cast %40 : vector<1x64x1xf32> to vector<64x1xf32>
    %42 = vector.shape_cast %39 : vector<64x1xf32> to vector<1x64x1xf32>
    tpu.vector_store %arg8[%c0_25, %c0_26, %c0_27], %42 {strides = array<i32>} : memref<1x64x1xf32, #tpu.memory_space<vmem>>, vector<1x64x1xf32>,
    return
  }
  func.func @transform_0(%arg0: i32) -> (i32, i32) {
    %c0_i32 = arith.constant 0 : i32
    %c0_i32_0 = arith.constant 0 : i32
    return %c0_i32, %arg0 : i32, i32
  }
  func.func @transform_1(%arg0: i32) -> (i32, i32) {
    %c0_i32 = arith.constant 0 : i32
    %c0_i32_0 = arith.constant 0 : i32
    %c0_i32_1 = arith.constant 0 : i32
    return %c0_i32, %c0_i32_0 : i32, i32
  }
  func.func @transform_2(%arg0: i32) -> (i32, i32) {
    %c0_i32 = arith.constant 0 : i32
    %c0_i32_0 = arith.constant 0 : i32
    %c0_i32_1 = arith.constant 0 : i32
    return %c0_i32, %c0_i32_0 : i32, i32
  }
  func.func @transform_3(%arg0: i32) -> (i32, i32) {
    %c0_i32 = arith.constant 0 : i32
    %c0_i32_0 = arith.constant 0 : i32
    %c0_i32_1 = arith.constant 0 : i32
    return %c0_i32, %c0_i32_0 : i32, i32
  }
  func.func @transform_4(%arg0: i32) -> (i32, i32) {
    %c0_i32 = arith.constant 0 : i32
    %c0_i32_0 = arith.constant 0 : i32
    %c0_i32_1 = arith.constant 0 : i32
    return %c0_i32, %c0_i32_0 : i32, i32
  }
  func.func @transform_5(%arg0: i32) -> (i32, i32) {
    %c0_i32 = arith.constant 0 : i32
    %c0_i32_0 = arith.constant 0 : i32
    return %c0_i32, %arg0 : i32, i32
  }
  func.func @transform_6(%arg0: i32) -> (i32, i32, i32) {
    %c0_i32 = arith.constant 0 : i32
    %c0_i32_0 = arith.constant 0 : i32
    %c0_i32_1 = arith.constant 0 : i32
    return %arg0, %c0_i32, %c0_i32_0 : i32, i32, i32
  }
  func.func @transform_7(%arg0: i32) -> (i32, i32, i32) {
    %c0_i32 = arith.constant 0 : i32
    %c0_i32_0 = arith.constant 0 : i32
    %c0_i32_1 = arith.constant 0 : i32
    return %arg0, %c0_i32, %c0_i32_0 : i32, i32, i32
  }
}

module attributes {stable_mosaic.version = 11 : i64} {
  func.func @apply_layer_kernel(%arg0: i32, %arg1: memref<80x256xbf16, #tpu.memory_space<vmem>>, %arg2: memref<64x80xbf16, #tpu.memory_space<vmem>>, %arg3: memref<64x1xf32, #tpu.memory_space<vmem>>, %arg4: memref<64x1xf32, #tpu.memory_space<vmem>>, %arg5: memref<80x256xbf16, #tpu.memory_space<vmem>>) attributes {dimension_semantics = [#tpu.dimension_semantics<parallel>], iteration_bounds = array<i64: 2>, scalar_prefetch = 0 : i64, scratch_operands = 0 : i64, tpu.core_type = #tpu.core_type<tc>, window_params = [{transform_indices = @transform_0, window_bounds = array<i64: 80, 256>}, {pipeline_mode = #tpu.pipeline_mode<synchronous>, transform_indices = @transform_1, window_bounds = array<i64: 64, 80>}, {pipeline_mode = #tpu.pipeline_mode<synchronous>, transform_indices = @transform_2, window_bounds = array<i64: 64, 1>}, {pipeline_mode = #tpu.pipeline_mode<synchronous>, transform_indices = @transform_3, window_bounds = array<i64: 64, 1>}, {transform_indices = @transform_4, window_bounds = array<i64: 80, 256>}]} {
    %c0 = arith.constant 0 : index
    %c0_0 = arith.constant 0 : index
    %0 = vector.load %arg2[%c0, %c0_0] : memref<64x80xbf16, #tpu.memory_space<vmem>>, vector<64x80xbf16>
    %c0_1 = arith.constant 0 : index
    %c0_2 = arith.constant 0 : index
    %1 = vector.load %arg3[%c0_1, %c0_2] : memref<64x1xf32, #tpu.memory_space<vmem>>, vector<64x1xf32>
    %c0_3 = arith.constant 0 : index
    %c0_4 = arith.constant 0 : index
    %2 = vector.load %arg4[%c0_3, %c0_4] : memref<64x1xf32, #tpu.memory_space<vmem>>, vector<64x1xf32>
    %c256_i32 = arith.constant 256 : i32
    %3 = arith.muli %arg0, %c256_i32 : i32
    %4 = tpu.iota {dimensions = array<i32: 1>} : vector<1x256xi32>
    %5 = vector.broadcast %3 : i32 to vector<1x256xi32>
    %6 = arith.addi %5, %4 : vector<1x256xi32>
    %c480_i32 = arith.constant 480 : i32
    %7 = vector.broadcast %c480_i32 : i32 to vector<1x256xi32>
    %8 = arith.cmpi slt, %6, %7 : vector<1x256xi32>
    %cst = arith.constant 0.000000e+00 : bf16
    %9 = vector.broadcast %cst : bf16 to vector<8x256xbf16>
    %c0_5 = arith.constant 0 : index
    %c0_6 = arith.constant 0 : index
    %10 = vector.load %arg5[%c0_5, %c0_6] : memref<80x256xbf16, #tpu.memory_space<vmem>>, vector<8x256xbf16>
    tpu.vector_store %arg5[%c0_5, %c0_6], %9 {strides = array<i32>} : memref<80x256xbf16, #tpu.memory_space<vmem>>, vector<8x256xbf16>,
    %c72 = arith.constant 72 : index
    %c0_7 = arith.constant 0 : index
    %11 = vector.load %arg5[%c72, %c0_7] : memref<80x256xbf16, #tpu.memory_space<vmem>>, vector<8x256xbf16>
    tpu.vector_store %arg5[%c72, %c0_7], %9 {strides = array<i32>} : memref<80x256xbf16, #tpu.memory_space<vmem>>, vector<8x256xbf16>,
    %c0_8 = arith.constant 0 : index
    %c0_9 = arith.constant 0 : index
    %12 = vector.load %arg1[%c0_8, %c0_9] : memref<80x256xbf16, #tpu.memory_space<vmem>>, vector<80x256xbf16>
    %cst_10 = arith.constant dense<0.000000e+00> : vector<64x256xf32>
    %13 = tpu.matmul %0, %12, %cst_10 {dimension_numbers = #tpu.dot_dimension_numbers<[1], [0], [0], [1], [0, 0, 1, 1], [], []>} : vector<64x80xbf16>, vector<80x256xbf16>, vector<64x256xf32> -> vector<64x256xf32>
    %14 = vector.broadcast %1 : vector<64x1xf32> to vector<64x256xf32>
    %15 = arith.mulf %13, %14 : vector<64x256xf32>
    %16 = vector.broadcast %2 : vector<64x1xf32> to vector<64x256xf32>
    %17 = arith.addf %15, %16 : vector<64x256xf32>
    %cst_11 = arith.constant 0.000000e+00 : f32
    %18 = vector.broadcast %cst_11 : f32 to vector<64x256xf32>
    %19 = arith.cmpf oge, %17, %18 : vector<64x256xf32>
    %cst_12 = arith.constant 0.00999999977 : f32
    %20 = vector.broadcast %cst_12 : f32 to vector<64x256xf32>
    %21 = arith.mulf %20, %17 : vector<64x256xf32>
    %22 = arith.select %19, %17, %21 : vector<64x256xi1>, vector<64x256xf32>
    %cst_13 = arith.constant 0.000000e+00 : f32
    %23 = vector.shape_cast %8 : vector<1x256xi1> to vector<1x256xi1>
    %24 = vector.broadcast %23 : vector<1x256xi1> to vector<64x256xi1>
    %25 = vector.broadcast %cst_13 : f32 to vector<64x256xf32>
    %26 = arith.select %24, %22, %25 : vector<64x256xi1>, vector<64x256xf32>
    %27 = arith.truncf %26 : vector<64x256xf32> to vector<64x256xbf16>
    %c8 = arith.constant 8 : index
    %c0_14 = arith.constant 0 : index
    %28 = vector.load %arg5[%c8, %c0_14] : memref<80x256xbf16, #tpu.memory_space<vmem>>, vector<64x256xbf16>
    tpu.vector_store %arg5[%c8, %c0_14], %27 {strides = array<i32>} : memref<80x256xbf16, #tpu.memory_space<vmem>>, vector<64x256xbf16>,
    return
  }
  func.func @transform_0(%arg0: i32) -> (i32, i32) {
    %c0_i32 = arith.constant 0 : i32
    %c0_i32_0 = arith.constant 0 : i32
    return %c0_i32, %arg0 : i32, i32
  }
  func.func @transform_1(%arg0: i32) -> (i32, i32) {
    %c0_i32 = arith.constant 0 : i32
    %c0_i32_0 = arith.constant 0 : i32
    %c0_i32_1 = arith.constant 0 : i32
    return %c0_i32, %c0_i32_0 : i32, i32
  }
  func.func @transform_2(%arg0: i32) -> (i32, i32) {
    %c0_i32 = arith.constant 0 : i32
    %c0_i32_0 = arith.constant 0 : i32
    %c0_i32_1 = arith.constant 0 : i32
    return %c0_i32, %c0_i32_0 : i32, i32
  }
  func.func @transform_3(%arg0: i32) -> (i32, i32) {
    %c0_i32 = arith.constant 0 : i32
    %c0_i32_0 = arith.constant 0 : i32
    %c0_i32_1 = arith.constant 0 : i32
    return %c0_i32, %c0_i32_0 : i32, i32
  }
  func.func @transform_4(%arg0: i32) -> (i32, i32) {
    %c0_i32 = arith.constant 0 : i32
    %c0_i32_0 = arith.constant 0 : i32
    return %c0_i32, %arg0 : i32, i32
  }
}

</mosaic_0001>

<llo_original>
// kernel: tile.28
$region0: #{tile.28}
  #allocation0 [shape = 's32[1]{0}', space=sflag, size = 0x4, scoped, tag = 'scoped memory for tile.28']
  %s0 = inlined_call_operand.vmem [shape: f32[8], index: 0, kind: input, shape index: {}]
  %s1 = inlined_call_operand.vmem [shape: f32[8,8], index: 1, kind: output, shape index: {}]
  // Predicated region
  $region2: #{tile.28} parent=0 // pred_check
    _
  $region3: #{tile.28} parent=0 // pred_check_branch
    %3 = sbr.rel (0) target = $region5
  $region4: #{tile.28} parent=0 // pred_region
    _
  $region5: #{tile.28} parent=0 // pred_fallthru
    _
  %v4 = vld [vmem:[%s0] ss:$0 sm:$0xff]
  %5 = vst [vmem:[%s1] sm:$0xff] %v4

// kernel: tile.0
$region0: #{tile.0}
  %s0 = inlined_call_operand.vmem [shape: f32[8,8], index: 0, kind: input, shape index: {}]
  %s1 = inlined_call_operand.vmem [shape: f32[64,1], index: 1, kind: output, shape index: {}]
  %v2 = vld [vmem:[%s0] sm:$0xff]
  %vm3 = vcmask 7168
  %4 = vst.msk [vmem:[%s1] ss:$8 sm:$0xf] %vm3, %v2
  %5 = vst.msk [vmem:[%s1] ss:$8 sm:$0xf0] %vm3, %v2
  %v6 = vld [vmem:[%s0] sm:$0xff]
  %7 = vrot.lane.b32.xlu0 %v6, 127
  %v8 = vpop.permute.xlu0 %7
  %vm9 = vcmask 7168
  %s10 = scalar_lea.vmem %s1, 1
  %11 = vst.msk [vmem:[%s10] ss:$8 sm:$0xf] %vm9, %v8
  %s12 = scalar_lea.vmem %s1, 1
  %13 = vst.msk [vmem:[%s12] ss:$8 sm:$0xf0] %vm9, %v8
  %v14 = vld [vmem:[%s0] sm:$0xff]
  %15 = vrot.lane.b32.xlu0 %v14, 126
  %v16 = vpop.permute.xlu0 %15
  %vm17 = vcmask 7168
  %s18 = scalar_lea.vmem %s1, 2
  %19 = vst.msk [vmem:[%s18] ss:$8 sm:$0xf] %vm17, %v16
  %s20 = scalar_lea.vmem %s1, 2
  %21 = vst.msk [vmem:[%s20] ss:$8 sm:$0xf0] %vm17, %v16
  %v22 = vld [vmem:[%s0] sm:$0xff]
  %23 = vrot.lane.b32.xlu0 %v22, 125
  %v24 = vpop.permute.xlu0 %23
  %vm25 = vcmask 7168
  %s26 = scalar_lea.vmem %s1, 3
  %27 = vst.msk [vmem:[%s26] ss:$8 sm:$0xf] %vm25, %v24
  %s28 = scalar_lea.vmem %s1, 3
  %29 = vst.msk [vmem:[%s28] ss:$8 sm:$0xf0] %vm25, %v24
  %v30 = vld [vmem:[%s0] sm:$0xff]
  %31 = vrot.lane.b32.xlu0 %v30, 124
  %v32 = vpop.permute.xlu0 %31
  %vm33 = vcmask 7168
  %s34 = scalar_lea.vmem %s1, 4
  %35 = vst.msk [vmem:[%s34] ss:$8 sm:$0xf] %vm33, %v32
  %s36 = scalar_lea.vmem %s1, 4
  %37 = vst.msk [vmem:[%s36] ss:$8 sm:$0xf0] %vm33, %v32
  %v38 = vld [vmem:[%s0] sm:$0xff]
  %39 = vrot.lane.b32.xlu0 %v38, 123
  %v40 = vpop.permute.xlu0 %39
  %vm41 = vcmask 7168
  %s42 = scalar_lea.vmem %s1, 5
  %43 = vst.msk [vmem:[%s42] ss:$8 sm:$0xf] %vm41, %v40
  %s44 = scalar_lea.vmem %s1, 5
  %45 = vst.msk [vmem:[%s44] ss:$8 sm:$0xf0] %vm41, %v40
  %v46 = vld [vmem:[%s0] sm:$0xff]
  %47 = vrot.lane.b32.xlu0 %v46, 122
  %v48 = vpop.permute.xlu0 %47
  %vm49 = vcmask 7168
  %s50 = scalar_lea.vmem %s1, 6
  %51 = vst.msk [vmem:[%s50] ss:$8 sm:$0xf] %vm49, %v48
  %s52 = scalar_lea.vmem %s1, 6
  %53 = vst.msk [vmem:[%s52] ss:$8 sm:$0xf0] %vm49, %v48
  %v54 = vld [vmem:[%s0] sm:$0xff]
  %55 = vrot.lane.b32.xlu0 %v54, 121
  %v56 = vpop.permute.xlu0 %55
  %vm57 = vcmask 7168
  %s58 = scalar_lea.vmem %s1, 7
  %59 = vst.msk [vmem:[%s58] ss:$8 sm:$0xf] %vm57, %v56
  %s60 = scalar_lea.vmem %s1, 7
  %61 = vst.msk [vmem:[%s60] ss:$8 sm:$0xf0] %vm57, %v56

// kernel: temporal_block_forward.3
$region0: #{temporal_block_forward.3}
  #allocation0 [shape = 'u32[]', space=smem, size = 0x4, offset = 0x4, fixed_abs, tag = 'smem constant byte address 0x4 - core index']
  #allocation1 [shape = 'u32[72,128]{1,0:T(1,128)}', space=vmem, size = 0x9000, scoped, tag = 'internal scratch']
  %s0 = inlined_call_operand.vmem [shape: bf16[80,512], index: 0, kind: input, shape index: {}]
  %s1 = inlined_call_operand.vmem [shape: bf16[64,80], index: 1, kind: input, shape index: {}]
  %s2 = inlined_call_operand.vmem [shape: f32[2,64,1], index: 2, kind: output, shape index: {0}]
  %s3 = inlined_call_operand.vmem [shape: f32[2,64,1], index: 3, kind: output, shape index: {1}]
  %4 = xla_tuple %s2, %s3
  %s5 = sld [smem:[#allocation0]]
  $region87: #{temporal_block_forward.3} parent=0
    _
  %s7 = ssub.s32 1, %s5
  %s8 = scalar_select 0, %s7, %s5
  $region1: #{temporal_block_forward.3} parent=0
    #allocation2 [shape = 'u8[81920]{0}', space=vmem, size = 0x14000, scoped, tag = 'input window, operand 0']
    loop: start=0, step=1, limit=4
    $region2: #{temporal_block_forward.3} parent=1 // loop_pre_header
      _
    $region3: #{temporal_block_forward.3} parent=1 // loop_header
      %s10 = sphi 0, %s14
      %p11 = scmp.ge.s32.totalorder %s10, 4
      %s20 = sphi 0, %s22
      %s23 = sphi 0, %s20
      %s24 = sphi 0, %s23
      %s40 = sphi 0, %s24
      %s44 = sphi 0, %s44
      %s46 = sphi 0, %s44
      %s47 = sphi 0, %s46
      %s61 = sphi 0, %s47
      %s67 = sphi 0, %s69
      %s70 = sphi 0, %s67
      %s71 = sphi 0, %s70
      %s87 = sphi 0, %s71
      %s93 = sphi 0, %s95
      %s96 = sphi 0, %s93
      %s97 = sphi 0, %s96
      %s113 = sphi 0, %s97
    $region4: #{temporal_block_forward.3} parent=1 // loop_header_branch
      %13 = sbr.rel (%p11) target = $region8
    $region5: #{temporal_block_forward.3} parent=1 // loop_body
      %s15 = ssub.s32 %s10, 1
      %s16 = ssub.s32 %s10, 2
      %s17 = sadd.s32 %s10, 1
      %s18 = ssub.s32 %s10, %s17
      %p19 = scmp.eq.s32.totalorder %s18, 0
      %s21 = sadd.s32 %s20, 1
      %s22 = scalar_select %p19, %s20, %s21
      %p25 = pneg %p19
      %p26 = scmp.eq.s32.totalorder %s10, 1
      %p27 = por %p25, %p26
      %p28 = scmp.ne.s32.totalorder %s20, %s23
      %p29 = scmp.eq.s32.totalorder %s10, 0
      %p30 = por %p28, %p29
      %p31 = scmp.ne.s32.totalorder %s20, %s23
      %p32 = scmp.eq.s32.totalorder %s15, 1
      %p33 = por %p31, %p32
      %p34 = scmp.ne.s32.totalorder %s23, %s24
      %p35 = scmp.eq.s32.totalorder %s15, 0
      %p36 = por %p34, %p35
      %p37 = scmp.ne.s32.totalorder %s23, %s24
      %p38 = scmp.eq.s32.totalorder %s16, 1
      %p39 = por %p37, %p38
      %p41 = scmp.ne.s32.totalorder %s24, %s40
      %p42 = scmp.eq.s32.totalorder %s16, 0
      %p43 = por %p41, %p42
      %s45 = sadd.s32 %s44, 1
      %p48 = scmp.eq.s32.totalorder %s10, 1
      %p49 = scmp.ne.s32.totalorder %s44, %s46
      %p50 = scmp.eq.s32.totalorder %s10, 0
      %p51 = por %p49, %p50
      %p52 = scmp.ne.s32.totalorder %s44, %s46
      %p53 = scmp.eq.s32.totalorder %s15, 1
      %p54 = por %p52, %p53
      %p55 = scmp.ne.s32.totalorder %s46, %s47
      %p56 = scmp.eq.s32.totalorder %s15, 0
      %p57 = por %p55, %p56
      %p58 = scmp.ne.s32.totalorder %s46, %s47
      %p59 = scmp.eq.s32.totalorder %s16, 1
      %p60 = por %p58, %p59
      %p62 = scmp.ne.s32.totalorder %s47, %s61
      %p63 = scmp.eq.s32.totalorder %s16, 0
      %p64 = por %p62, %p63
      %s65 = ssub.s32 %s10, %s17
      %p66 = scmp.eq.s32.totalorder %s65, 0
      %s68 = sadd.s32 %s67, 1
      %s69 = scalar_select %p66, %s67, %s68
      %p72 = pneg %p66
      %p73 = scmp.eq.s32.totalorder %s10, 1
      %p74 = por %p72, %p73
      %p75 = scmp.ne.s32.totalorder %s67, %s70
      %p76 = scmp.eq.s32.totalorder %s10, 0
      %p77 = por %p75, %p76
      %p78 = scmp.ne.s32.totalorder %s67, %s70
      %p79 = scmp.eq.s32.totalorder %s15, 1
      %p80 = por %p78, %p79
      %p81 = scmp.ne.s32.totalorder %s70, %s71
      %p82 = scmp.eq.s32.totalorder %s15, 0
      %p83 = por %p81, %p82
      %p84 = scmp.ne.s32.totalorder %s70, %s71
      %p85 = scmp.eq.s32.totalorder %s16, 1
      %p86 = por %p84, %p85
      %p88 = scmp.ne.s32.totalorder %s71, %s87
      %p89 = scmp.eq.s32.totalorder %s16, 0
      %p90 = por %p88, %p89
      %s91 = ssub.s32 %s10, %s17
      %p92 = scmp.eq.s32.totalorder %s91, 0
      %s94 = sadd.s32 %s93, 1
      %s95 = scalar_select %p92, %s93, %s94
      %p98 = pneg %p92
      %p99 = scmp.eq.s32.totalorder %s10, 1
      %p100 = por %p98, %p99
      %p101 = scmp.ne.s32.totalorder %s93, %s96
      %p102 = scmp.eq.s32.totalorder %s10, 0
      %p103 = por %p101, %p102
      %p104 = scmp.ne.s32.totalorder %s93, %s96
      %p105 = scmp.eq.s32.totalorder %s15, 1
      %p106 = por %p104, %p105
      %p107 = scmp.ne.s32.totalorder %s96, %s97
      %p108 = scmp.eq.s32.totalorder %s15, 0
      %p109 = por %p107, %p108
      %p110 = scmp.ne.s32.totalorder %s96, %s97
      %p111 = scmp.eq.s32.totalorder %s16, 1
      %p112 = por %p110, %p111
      %p114 = scmp.ne.s32.totalorder %s97, %s113
      %p115 = scmp.eq.s32.totalorder %s16, 0
      %p116 = por %p114, %p115
      %p117 = scmp.le.s32.totalorder 1, %s10
      %p118 = scmp.lt.s32.totalorder %s10, 3
      %p119 = pnand %p117, %p118
      %p120 = pneg %p119
      // Predicated region
      $region9: #{temporal_block_forward.3} parent=5 // pred_check
        _
      $region10: #{temporal_block_forward.3} parent=5 // pred_check_branch
        %122 = sbr.rel (%p119) target = $region12
      $region11: #{temporal_block_forward.3} parent=5 // pred_region
        %s123 = ssub.s32 %s10, 1
        // Predicated region
        $region13: #{temporal_block_forward.3} parent=11 // pred_check
          %p124 = pneg %p57
        $region14: #{temporal_block_forward.3} parent=11 // pred_check_branch
          %126 = sbr.rel (%p124) target = $region16
        $region15: #{temporal_block_forward.3} parent=11 // pred_region
          _
        $region16: #{temporal_block_forward.3} parent=11 // pred_fallthru
          _
      $region12: #{temporal_block_forward.3} parent=5 // pred_fallthru
        _
      %p127 = scmp.lt.s32.totalorder %s10, 2
      // Predicated region
      $region17: #{temporal_block_forward.3} parent=5 // pred_check
        %p128 = pneg %p127
      $region18: #{temporal_block_forward.3} parent=5 // pred_check_branch
        %130 = sbr.rel (%p128) target = $region20
      $region19: #{temporal_block_forward.3} parent=5 // pred_region
        // Predicated region
        $region21: #{temporal_block_forward.3} parent=19 // pred_check
          %p131 = pneg %p30
        $region22: #{temporal_block_forward.3} parent=19 // pred_check_branch
          %133 = sbr.rel (%p131) target = $region24
        $region23: #{temporal_block_forward.3} parent=19 // pred_region
          %s134 = sand.u32 %s20, 1
          %s135 = sand.u32 %s20, 1
          %s136 = smul.addr %s135, 80
          %s137 = scalar_lea.vmem [#allocation2], %s136
          %s138 = smul.u32 2, %s10
          %s139 = smul.addr %s138, 4
          %s140 = scalar_lea.vmem %s0, %s139
          // Predicated region
          $region25: #{temporal_block_forward.3} parent=23 // pred_check
            _
          $region26: #{temporal_block_forward.3} parent=23 // pred_check_branch
            %142 = sbr.rel (0) target = $region28
          $region27: #{temporal_block_forward.3} parent=23 // pred_region
            // Predicated region
            $region29: #{temporal_block_forward.3} parent=27 // pred_check
              _
            $region30: #{temporal_block_forward.3} parent=27 // pred_check_branch
              %144 = sbr.rel (0) target = $region32
            $region31: #{temporal_block_forward.3} parent=27 // pred_region
              // Predicated region
              $region44: #{temporal_block_forward.3} parent=31 // pred_check
                _
              $region45: #{temporal_block_forward.3} parent=31 // pred_check_branch
                %178 = sbr.rel (0) target = $region47
              $region46: #{temporal_block_forward.3} parent=31 // pred_region
                loop: start=0, step=1, limit=1
                $region48: #{temporal_block_forward.3} parent=46 // loop_pre_header
                  _
                $region49: #{temporal_block_forward.3} parent=46 // loop_header
                  %s180 = sphi 0, %s184
                  %p181 = scmp.ge.s32.totalorder %s180, 1
                  %s185 = sphi %s140, %s140
                  %s186 = sphi %s137, %s137
                $region50: #{temporal_block_forward.3} parent=46 // loop_header_branch
                  %183 = sbr.rel (%p181) target = $region54
                $region51: #{temporal_block_forward.3} parent=46 // loop_body
                  %v187 = vld [vmem:[%s185] sm:$0xff]
                  %188 = vst [vmem:[%s186] sm:$0xff] %v187
                  %v189 = vld [vmem:[%s185 + $0x10] sm:$0xff]
                  %190 = vst [vmem:[%s186 + $0x8] sm:$0xff] %v189
                  %v191 = vld [vmem:[%s185 + $0x20] sm:$0xff]
                  %192 = vst [vmem:[%s186 + $0x10] sm:$0xff] %v191
                  %v193 = vld [vmem:[%s185 + $0x30] sm:$0xff]
                  %194 = vst [vmem:[%s186 + $0x18] sm:$0xff] %v193
                  %v195 = vld [vmem:[%s185 + $0x40] sm:$0xff]
                  %196 = vst [vmem:[%s186 + $0x20] sm:$0xff] %v195
                  %v197 = vld [vmem:[%s185 + $0x50] sm:$0xff]
                  %198 = vst [vmem:[%s186 + $0x28] sm:$0xff] %v197
                  %v199 = vld [vmem:[%s185 + $0x60] sm:$0xff]
                  %200 = vst [vmem:[%s186 + $0x30] sm:$0xff] %v199
                  %v201 = vld [vmem:[%s185 + $0x70] sm:$0xff]
                  %202 = vst [vmem:[%s186 + $0x38] sm:$0xff] %v201
                  %v203 = vld [vmem:[%s185 + $0x80] sm:$0xff]
                  %204 = vst [vmem:[%s186 + $0x40] sm:$0xff] %v203
                  %v205 = vld [vmem:[%s185 + $0x90] sm:$0xff]
                  %206 = vst [vmem:[%s186 + $0x48] sm:$0xff] %v205
                $region52: #{temporal_block_forward.3} parent=46 // loop_footer
                  %s184 = sadd.s32 1, %s180
                $region53: #{temporal_block_forward.3} parent=46 // loop_footer_branch
                  %179 = sbr.rel target = $region49
                $region54: #{temporal_block_forward.3} parent=46 // loop_exit
                  _
              $region47: #{temporal_block_forward.3} parent=31 // pred_fallthru
                _
              // Predicated region
              $region55: #{temporal_block_forward.3} parent=31 // pred_check
                _
              $region56: #{temporal_block_forward.3} parent=31 // pred_check_branch
                %208 = sbr.rel target = $region58
              $region57: #{temporal_block_forward.3} parent=31 // pred_region
                _
              $region58: #{temporal_block_forward.3} parent=31 // pred_fallthru
                _
            $region32: #{temporal_block_forward.3} parent=27 // pred_fallthru
              _
            // Predicated region
            $region33: #{temporal_block_forward.3} parent=27 // pred_check
              _
            $region34: #{temporal_block_forward.3} parent=27 // pred_check_branch
              %146 = sbr.rel target = $region36
            $region35: #{temporal_block_forward.3} parent=27 // pred_region
              %s148 = ssub.s32 256, 1
              loop: start=0, step=1, limit=1
              $region37: #{temporal_block_forward.3} parent=35 // loop_pre_header
                _
              $region38: #{temporal_block_forward.3} parent=35 // loop_header
                %s150 = sphi 0, %s154
                %p151 = scmp.ge.s32.totalorder %s150, 1
                %s155 = sphi %s140, %s140
                %s156 = sphi %s137, %s137
              $region39: #{temporal_block_forward.3} parent=35 // loop_header_branch
                %153 = sbr.rel (%p151) target = $region43
              $region40: #{temporal_block_forward.3} parent=35 // loop_body
                %v157 = vld [vmem:[%s155] sm:%s148]
                %158 = vst [vmem:[%s156] sm:%s148] %v157
                %v159 = vld [vmem:[%s155 + $0x10] sm:%s148]
                %160 = vst [vmem:[%s156 + $0x8] sm:%s148] %v159
                %v161 = vld [vmem:[%s155 + $0x20] sm:%s148]
                %162 = vst [vmem:[%s156 + $0x10] sm:%s148] %v161
                %v163 = vld [vmem:[%s155 + $0x30] sm:%s148]
                %164 = vst [vmem:[%s156 + $0x18] sm:%s148] %v163
                %v165 = vld [vmem:[%s155 + $0x40] sm:%s148]
                %166 = vst [vmem:[%s156 + $0x20] sm:%s148] %v165
                %v167 = vld [vmem:[%s155 + $0x50] sm:%s148]
                %168 = vst [vmem:[%s156 + $0x28] sm:%s148] %v167
                %v169 = vld [vmem:[%s155 + $0x60] sm:%s148]
                %170 = vst [vmem:[%s156 + $0x30] sm:%s148] %v169
                %v171 = vld [vmem:[%s155 + $0x70] sm:%s148]
                %172 = vst [vmem:[%s156 + $0x38] sm:%s148] %v171
                %v173 = vld [vmem:[%s155 + $0x80] sm:%s148]
                %174 = vst [vmem:[%s156 + $0x40] sm:%s148] %v173
                %v175 = vld [vmem:[%s155 + $0x90] sm:%s148]
                %176 = vst [vmem:[%s156 + $0x48] sm:%s148] %v175
              $region41: #{temporal_block_forward.3} parent=35 // loop_footer
                %s154 = sadd.s32 1, %s150
              $region42: #{temporal_block_forward.3} parent=35 // loop_footer_branch
                %149 = sbr.rel target = $region38
              $region43: #{temporal_block_forward.3} parent=35 // loop_exit
                _
            $region36: #{temporal_block_forward.3} parent=27 // pred_fallthru
              _
          $region28: #{temporal_block_forward.3} parent=23 // pred_fallthru
            _
          %209 = vnop
        $region24: #{temporal_block_forward.3} parent=19 // pred_fallthru
          _
      $region20: #{temporal_block_forward.3} parent=5 // pred_fallthru
        _
      %p210 = scmp.le.s32.totalorder 1, %s10
      %p211 = scmp.lt.s32.totalorder %s10, 3
      %p212 = pnand %p210, %p211
      %p213 = pneg %p212
      // Predicated region
      $region59: #{temporal_block_forward.3} parent=5 // pred_check
        _
      $region60: #{temporal_block_forward.3} parent=5 // pred_check_branch
        %215 = sbr.rel (%p212) target = $region62
      $region61: #{temporal_block_forward.3} parent=5 // pred_region
        %s216 = ssub.s32 %s10, 1
        %s217 = sand.u32 %s23, 1
        %s218 = sand.u32 %s23, 1
        %s219 = smul.addr %s218, 80
        %s220 = scalar_lea.vmem [#allocation2], %s219
        // Predicated region
        $region63: #{temporal_block_forward.3} parent=61 // pred_check
          %p221 = pneg %p36
        $region64: #{temporal_block_forward.3} parent=61 // pred_check_branch
          %223 = sbr.rel (%p221) target = $region66
        $region65: #{temporal_block_forward.3} parent=61 // pred_region
          _
        $region66: #{temporal_block_forward.3} parent=61 // pred_fallthru
          _
        %s224 = sand.u32 %s23, 1
        %s225 = sand.u32 %s23, 1
        %s226 = smul.addr %s225, 80
        %s227 = scalar_lea.vmem [#allocation2], %s226
        %p228 = pneg %p36
        %p229 = pneg %p33
        %p230 = pneg %p57
        %p231 = pneg %p54
        %p232 = pneg %p83
        %p233 = pneg %p80
        %p234 = scmp.lt.s32.totalorder %s15, 1
        %s235 = scalar_select %p234, %s15, 1
        %s236 = smul.addr %s235, 8
        %s237 = smul.addr %s236, 8
        %s238 = scalar_lea.vmem %s2, %s237
        %p239 = pneg %p109
        %p240 = pneg %p106
        %p241 = scmp.lt.s32.totalorder %s15, 1
        %s242 = scalar_select %p241, %s15, 1
        %s243 = smul.addr %s242, 8
        %s244 = smul.addr %s243, 8
        %s245 = scalar_lea.vmem %s3, %s244
        %s246 = smul.u32 2, %s15
        %p247 = scmp.lt.s32.totalorder %s15, 1
        %s248 = scalar_select %p247, %s15, 1
        %s249 = smul.addr %s248, 8
        %s250 = smul.addr %s249, 8
        %s251 = scalar_lea.vmem %s2, %s250
        %p252 = scmp.lt.s32.totalorder %s15, 1
        %s253 = scalar_select %p252, %s15, 1
        %s254 = smul.addr %s253, 8
        %s255 = smul.addr %s254, 8
        %s256 = scalar_lea.vmem %s3, %s255
        %v258 = vld [vmem:[%s1] sm:$0xf]
        %v259 = vld [vmem:[%s1 + $0x4] sm:$0xf]
        %v260 = vld [vmem:[%s1 + $0x8] sm:$0xf]
        %v261 = vld [vmem:[%s1 + $0xc] sm:$0xf]
        %v262 = vld [vmem:[%s1 + $0x10] sm:$0xf]
        %v263 = vld [vmem:[%s1 + $0x14] sm:$0xf]
        %v264 = vld [vmem:[%s1 + $0x18] sm:$0xf]
        %v265 = vld [vmem:[%s1 + $0x1c] sm:$0xf]
        %v266 = vld [vmem:[%s220] sm:$0xff]
        %v267 = vld [vmem:[%s220 + $0x8] sm:$0xff]
        %v268 = vld [vmem:[%s220 + $0x10] sm:$0xff]
        %v269 = vld [vmem:[%s220 + $0x18] sm:$0xff]
        %v270 = vld [vmem:[%s220 + $0x20] sm:$0xff]
        %v271 = vld [vmem:[%s220 + $0x28] sm:$0xff]
        %v272 = vld [vmem:[%s220 + $0x30] sm:$0xff]
        %v273 = vld [vmem:[%s220 + $0x38] sm:$0xff]
        %v274 = vld [vmem:[%s220 + $0x40] sm:$0xff]
        %v275 = vld [vmem:[%s220 + $0x48] sm:$0xff]
        %v284 = vunpack.c.l.b16 %v258
        %v285 = vunpack.c.l.b16 %v259
        %v286 = vunpack.c.l.b16 %v260
        %v287 = vunpack.c.l.b16 %v261
        %v288 = vunpack.c.l.b16 %v262
        %v289 = vunpack.c.l.b16 %v263
        %v290 = vunpack.c.l.b16 %v264
        %v291 = vunpack.c.l.b16 %v265
        %v292 = vpack.c.b16 %v285, %v284
        %v293 = vpack.c.b16 %v287, %v286
        %v294 = vpack.c.b16 %v289, %v288
        %v295 = vpack.c.b16 %v291, %v290
        %v306 = vunpack.c.l.b16 %v266
        %v307 = vunpack.c.h.b16 %v266
        %v308 = vunpack.c.l.b16 %v267
        %v309 = vunpack.c.h.b16 %v267
        %v310 = vunpack.c.l.b16 %v268
        %v311 = vunpack.c.h.b16 %v268
        %v312 = vunpack.c.l.b16 %v269
        %v313 = vunpack.c.h.b16 %v269
        %v314 = vunpack.c.l.b16 %v270
        %v315 = vunpack.c.h.b16 %v270
        %v316 = vunpack.c.l.b16 %v271
        %v317 = vunpack.c.h.b16 %v271
        %v318 = vunpack.c.l.b16 %v272
        %v319 = vunpack.c.h.b16 %v272
        %v320 = vunpack.c.l.b16 %v273
        %v321 = vunpack.c.h.b16 %v273
        %v322 = vunpack.c.l.b16 %v274
        %v323 = vunpack.c.h.b16 %v274
        %v324 = vunpack.c.l.b16 %v275
        %v325 = vunpack.c.h.b16 %v275
        %v326 = vpack.c.b16 %v308, %v306
        %v327 = vpack.c.b16 %v309, %v307
        %v328 = vpack.c.b16 %v312, %v310
        %v329 = vpack.c.b16 %v313, %v311
        %v330 = vpack.c.b16 %v316, %v314
        %v331 = vpack.c.b16 %v317, %v315
        %v332 = vpack.c.b16 %v320, %v318
        %v333 = vpack.c.b16 %v321, %v319
        %v334 = vpack.c.b16 %v324, %v322
        %v335 = vpack.c.b16 %v325, %v323
        %vm346 = vcmask 654336
        %v348 = vsel %vm346, %v292, 0
        %v351 = vsel %vm346, %v293, 0
        %v354 = vsel %vm346, %v294, 0
        %v357 = vsel %vm346, %v295, 0
        %359 = vmatpush.bf16.msra.mxu0 0
        %360 = vmatpush.bf16.msra.mxu0 0
        %361 = vmatpush.bf16.msra.mxu0 0
        %362 = vmatpush.bf16.msra.mxu0 %v334
        %363 = vmatpush.bf16.msra.mxu0 %v332
        %364 = vmatpush.bf16.msra.mxu0 %v330
        %365 = vmatpush.bf16.msra.mxu0 %v328
        %366 = vmatpush.bf16.msra.mxu0 %v326
        %367 = vmatmul.bf16.gmra.mxu0 %v348
        %v368 = vpop.f32.mrf.mxu0
        %v369 = vadd.f32 0.0, %v368
        %v370 = vpop.f32.mrf.mxu0
        %v371 = vadd.f32 0.0, %v370
        %372 = vmatmul.bf16.gmra.mxu0 %v351
        %v373 = vpop.f32.mrf.mxu0
        %v374 = vadd.f32 0.0, %v373
        %v375 = vpop.f32.mrf.mxu0
        %v376 = vadd.f32 0.0, %v375
        %377 = vmatmul.bf16.gmra.mxu0 %v354
        %v378 = vpop.f32.mrf.mxu0
        %v379 = vadd.f32 0.0, %v378
        %v380 = vpop.f32.mrf.mxu0
        %v381 = vadd.f32 0.0, %v380
        %382 = vmatmul.bf16.gmra.mxu0 %v357
        %v383 = vpop.f32.mrf.mxu0
        %v384 = vadd.f32 0.0, %v383
        %v385 = vpop.f32.mrf.mxu0
        %v386 = vadd.f32 0.0, %v385
        %387 = vdwg.mxu0
        %388 = vmatpush.bf16.msra.mxu0 0
        %389 = vmatpush.bf16.msra.mxu0 0
        %390 = vmatpush.bf16.msra.mxu0 0
        %391 = vmatpush.bf16.msra.mxu0 %v335
        %392 = vmatpush.bf16.msra.mxu0 %v333
        %393 = vmatpush.bf16.msra.mxu0 %v331
        %394 = vmatpush.bf16.msra.mxu0 %v329
        %395 = vmatpush.bf16.msra.mxu0 %v327
        %396 = vmatmul.bf16.gmra.mxu0 %v348
        %v397 = vpop.f32.mrf.mxu0
        %v398 = vadd.f32 0.0, %v397
        %v399 = vpop.f32.mrf.mxu0
        %v400 = vadd.f32 0.0, %v399
        %401 = vmatmul.bf16.gmra.mxu0 %v351
        %v402 = vpop.f32.mrf.mxu0
        %v403 = vadd.f32 0.0, %v402
        %v404 = vpop.f32.mrf.mxu0
        %v405 = vadd.f32 0.0, %v404
        %406 = vmatmul.bf16.gmra.mxu0 %v354
        %v407 = vpop.f32.mrf.mxu0
        %v408 = vadd.f32 0.0, %v407
        %v409 = vpop.f32.mrf.mxu0
        %v410 = vadd.f32 0.0, %v409
        %411 = vmatmul.bf16.gmra.mxu0 %v357
        %v412 = vpop.f32.mrf.mxu0
        %v413 = vadd.f32 0.0, %v412
        %v414 = vpop.f32.mrf.mxu0
        %v415 = vadd.f32 0.0, %v414
        %416 = vdwg.mxu0
        %v417 = vadd.f32 %v369, %v398
        %418 = vadd.xlane.f32.xlu0 %v417
        %v419 = vpop.xlane.xlu0 %418
        %v420 = vadd.f32 %v371, %v400
        %421 = vadd.xlane.f32.xlu0 %v420
        %v422 = vpop.xlane.xlu0 %421
        %v423 = vadd.f32 %v374, %v403
        %424 = vadd.xlane.f32.xlu0 %v423
        %v425 = vpop.xlane.xlu0 %424
        %v426 = vadd.f32 %v376, %v405
        %427 = vadd.xlane.f32.xlu0 %v426
        %v428 = vpop.xlane.xlu0 %427
        %v429 = vadd.f32 %v379, %v408
        %430 = vadd.xlane.f32.xlu0 %v429
        %v431 = vpop.xlane.xlu0 %430
        %v432 = vadd.f32 %v381, %v410
        %433 = vadd.xlane.f32.xlu0 %v432
        %v434 = vpop.xlane.xlu0 %433
        %v435 = vadd.f32 %v384, %v413
        %436 = vadd.xlane.f32.xlu0 %v435
        %v437 = vpop.xlane.xlu0 %436
        %v438 = vadd.f32 %v386, %v415
        %439 = vadd.xlane.f32.xlu0 %v438
        %v440 = vpop.xlane.xlu0 %439
        %vm441 = vcmask 7168
        %442 = vst.msk [vmem:[%s251] sm:$0xff] %vm441, %v419
        %443 = vst.msk [vmem:[%s251 + $0x8] sm:$0xff] %vm441, %v422
        %444 = vst.msk [vmem:[%s251 + $0x10] sm:$0xff] %vm441, %v425
        %445 = vst.msk [vmem:[%s251 + $0x18] sm:$0xff] %vm441, %v428
        %446 = vst.msk [vmem:[%s251 + $0x20] sm:$0xff] %vm441, %v431
        %447 = vst.msk [vmem:[%s251 + $0x28] sm:$0xff] %vm441, %v434
        %448 = vst.msk [vmem:[%s251 + $0x30] sm:$0xff] %vm441, %v437
        %449 = vst.msk [vmem:[%s251 + $0x38] sm:$0xff] %vm441, %v440
        %v450 = vmul.f32 %v369, %v369
        %v451 = vmul.f32 %v398, %v398
        %v452 = vmul.f32 %v371, %v371
        %v453 = vmul.f32 %v400, %v400
        %v454 = vmul.f32 %v374, %v374
        %v455 = vmul.f32 %v403, %v403
        %v456 = vmul.f32 %v376, %v376
        %v457 = vmul.f32 %v405, %v405
        %v458 = vmul.f32 %v379, %v379
        %v459 = vmul.f32 %v408, %v408
        %v460 = vmul.f32 %v381, %v381
        %v461 = vmul.f32 %v410, %v410
        %v462 = vmul.f32 %v384, %v384
        %v463 = vmul.f32 %v413, %v413
        %v464 = vmul.f32 %v386, %v386
        %v465 = vmul.f32 %v415, %v415
        %v466 = vadd.f32 %v450, %v451
        %467 = vadd.xlane.f32.xlu0 %v466
        %v468 = vpop.xlane.xlu0 %467
        %v469 = vadd.f32 %v452, %v453
        %470 = vadd.xlane.f32.xlu0 %v469
        %v471 = vpop.xlane.xlu0 %470
        %v472 = vadd.f32 %v454, %v455
        %473 = vadd.xlane.f32.xlu0 %v472
        %v474 = vpop.xlane.xlu0 %473
        %v475 = vadd.f32 %v456, %v457
        %476 = vadd.xlane.f32.xlu0 %v475
        %v477 = vpop.xlane.xlu0 %476
        %v478 = vadd.f32 %v458, %v459
        %479 = vadd.xlane.f32.xlu0 %v478
        %v480 = vpop.xlane.xlu0 %479
        %v481 = vadd.f32 %v460, %v461
        %482 = vadd.xlane.f32.xlu0 %v481
        %v483 = vpop.xlane.xlu0 %482
        %v484 = vadd.f32 %v462, %v463
        %485 = vadd.xlane.f32.xlu0 %v484
        %v486 = vpop.xlane.xlu0 %485
        %v487 = vadd.f32 %v464, %v465
        %488 = vadd.xlane.f32.xlu0 %v487
        %v489 = vpop.xlane.xlu0 %488
        %490 = vst.msk [vmem:[%s256] sm:$0xff] %vm441, %v468
        %491 = vst.msk [vmem:[%s256 + $0x8] sm:$0xff] %vm441, %v471
        %492 = vst.msk [vmem:[%s256 + $0x10] sm:$0xff] %vm441, %v474
        %493 = vst.msk [vmem:[%s256 + $0x18] sm:$0xff] %vm441, %v477
        %494 = vst.msk [vmem:[%s256 + $0x20] sm:$0xff] %vm441, %v480
        %495 = vst.msk [vmem:[%s256 + $0x28] sm:$0xff] %vm441, %v483
        %496 = vst.msk [vmem:[%s256 + $0x30] sm:$0xff] %vm441, %v486
        %497 = vst.msk [vmem:[%s256 + $0x38] sm:$0xff] %vm441, %v489
        %p498 = scmp.lt.s32.totalorder %s15, 1
        %s499 = scalar_select %p498, %s15, 1
        %s500 = smul.addr %s499, 8
        %s501 = smul.addr %s500, 8
        %s502 = scalar_lea.vmem %s2, %s501
        %p503 = scmp.lt.s32.totalorder %s15, 1
        %s504 = scalar_select %p503, %s15, 1
        %s505 = smul.addr %s504, 8
        %s506 = smul.addr %s505, 8
        %s507 = scalar_lea.vmem %s3, %s506
        // Predicated region
        $region67: #{temporal_block_forward.3} parent=61 // pred_check
          %p508 = pneg %p80
        $region68: #{temporal_block_forward.3} parent=61 // pred_check_branch
          %510 = sbr.rel (%p508) target = $region70
        $region69: #{temporal_block_forward.3} parent=61 // pred_region
          _
        $region70: #{temporal_block_forward.3} parent=61 // pred_fallthru
          _
        // Predicated region
        $region71: #{temporal_block_forward.3} parent=61 // pred_check
          %p511 = pneg %p106
        $region72: #{temporal_block_forward.3} parent=61 // pred_check_branch
          %513 = sbr.rel (%p511) target = $region74
        $region73: #{temporal_block_forward.3} parent=61 // pred_region
          _
        $region74: #{temporal_block_forward.3} parent=61 // pred_fallthru
          _
      $region62: #{temporal_block_forward.3} parent=5 // pred_fallthru
        _
      %p514 = scmp.le.s32.totalorder 2, %s10
      // Predicated region
      $region75: #{temporal_block_forward.3} parent=5 // pred_check
        %p515 = pneg %p514
      $region76: #{temporal_block_forward.3} parent=5 // pred_check_branch
        %517 = sbr.rel (%p515) target = $region78
      $region77: #{temporal_block_forward.3} parent=5 // pred_region
        %s518 = ssub.s32 %s10, 2
        // Predicated region
        $region79: #{temporal_block_forward.3} parent=77 // pred_check
          %p519 = pneg %p86
        $region80: #{temporal_block_forward.3} parent=77 // pred_check_branch
          %521 = sbr.rel (%p519) target = $region82
        $region81: #{temporal_block_forward.3} parent=77 // pred_region
          %p522 = scmp.lt.s32.totalorder %s16, 1
          %s523 = scalar_select %p522, %s16, 1
          %s524 = smul.addr %s523, 8
          %s525 = smul.addr %s524, 8
          %s526 = scalar_lea.vmem %s2, %s525
        $region82: #{temporal_block_forward.3} parent=77 // pred_fallthru
          _
        // Predicated region
        $region83: #{temporal_block_forward.3} parent=77 // pred_check
          %p527 = pneg %p112
        $region84: #{temporal_block_forward.3} parent=77 // pred_check_branch
          %529 = sbr.rel (%p527) target = $region86
        $region85: #{temporal_block_forward.3} parent=77 // pred_region
          %p530 = scmp.lt.s32.totalorder %s16, 1
          %s531 = scalar_select %p530, %s16, 1
          %s532 = smul.addr %s531, 8
          %s533 = smul.addr %s532, 8
          %s534 = scalar_lea.vmem %s3, %s533
        $region86: #{temporal_block_forward.3} parent=77 // pred_fallthru
          _
      $region78: #{temporal_block_forward.3} parent=5 // pred_fallthru
        _
    $region6: #{temporal_block_forward.3} parent=1 // loop_footer
      %s14 = sadd.s32 1, %s10
    $region7: #{temporal_block_forward.3} parent=1 // loop_footer_branch
      %9 = sbr.rel target = $region3
    $region8: #{temporal_block_forward.3} parent=1 // loop_exit
      _

// kernel: temporal_block_forward.4
$region0: #{temporal_block_forward.4}
  #allocation0 [shape = 'u32[]', space=smem, size = 0x4, offset = 0x4, fixed_abs, tag = 'smem constant byte address 0x4 - core index']
  #allocation1 [shape = 'u32[72,128]{1,0:T(1,128)}', space=vmem, size = 0x9000, scoped, tag = 'internal scratch']
  %s0 = inlined_call_operand.vmem [shape: bf16[80,512], index: 0, kind: input, shape index: {}]
  %s1 = inlined_call_operand.vmem [shape: bf16[64,80], index: 1, kind: input, shape index: {}]
  %s2 = inlined_call_operand.vmem [shape: f32[64,1], index: 2, kind: input, shape index: {}]
  %s3 = inlined_call_operand.vmem [shape: f32[64,1], index: 3, kind: input, shape index: {}]
  %s4 = inlined_call_operand.vmem [shape: bf16[64,80], index: 4, kind: input, shape index: {}]
  %s5 = inlined_call_operand.vmem [shape: bf16[80,512], index: 5, kind: output, shape index: {0}]
  %s6 = inlined_call_operand.vmem [shape: f32[2,64,1], index: 6, kind: output, shape index: {1}]
  %s7 = inlined_call_operand.vmem [shape: f32[2,64,1], index: 7, kind: output, shape index: {2}]
  %8 = xla_tuple %s5, %s6, %s7
  %s9 = sld [smem:[#allocation0]]
  $region141: #{temporal_block_forward.4} parent=0
    _
  %s11 = ssub.s32 1, %s9
  %s12 = scalar_select 0, %s11, %s9
  $region1: #{temporal_block_forward.4} parent=0
    #allocation2 [shape = 'u8[81920]{0}', space=vmem, size = 0x14000, scoped, tag = 'input window, operand 0']
    #allocation3 [shape = 'u8[81920]{0}', space=vmem, size = 0x14000, scoped, tag = 'output window, operand 0']
    loop: start=0, step=1, limit=4
    $region2: #{temporal_block_forward.4} parent=1 // loop_pre_header
      _
    $region3: #{temporal_block_forward.4} parent=1 // loop_header
      %s14 = sphi 0, %s18
      %p15 = scmp.ge.s32.totalorder %s14, 4
      %s24 = sphi 0, %s26
      %s27 = sphi 0, %s24
      %s28 = sphi 0, %s27
      %s44 = sphi 0, %s28
      %s48 = sphi 0, %s48
      %s50 = sphi 0, %s48
      %s51 = sphi 0, %s50
      %s65 = sphi 0, %s51
      %s69 = sphi 0, %s69
      %s71 = sphi 0, %s69
      %s72 = sphi 0, %s71
      %s86 = sphi 0, %s72
      %s90 = sphi 0, %s90
      %s92 = sphi 0, %s90
      %s93 = sphi 0, %s92
      %s107 = sphi 0, %s93
      %s111 = sphi 0, %s111
      %s113 = sphi 0, %s111
      %s114 = sphi 0, %s113
      %s128 = sphi 0, %s114
      %s134 = sphi 0, %s136
      %s137 = sphi 0, %s134
      %s138 = sphi 0, %s137
      %s154 = sphi 0, %s138
      %s160 = sphi 0, %s162
      %s163 = sphi 0, %s160
      %s164 = sphi 0, %s163
      %s180 = sphi 0, %s164
      %s186 = sphi 0, %s188
      %s189 = sphi 0, %s186
      %s190 = sphi 0, %s189
      %s206 = sphi 0, %s190
    $region4: #{temporal_block_forward.4} parent=1 // loop_header_branch
      %17 = sbr.rel (%p15) target = $region8
    $region5: #{temporal_block_forward.4} parent=1 // loop_body
      %s19 = ssub.s32 %s14, 1
      %s20 = ssub.s32 %s14, 2
      %s21 = sadd.s32 %s14, 1
      %s22 = ssub.s32 %s14, %s21
      %p23 = scmp.eq.s32.totalorder %s22, 0
      %s25 = sadd.s32 %s24, 1
      %s26 = scalar_select %p23, %s24, %s25
      %p29 = pneg %p23
      %p30 = scmp.eq.s32.totalorder %s14, 1
      %p31 = por %p29, %p30
      %p32 = scmp.ne.s32.totalorder %s24, %s27
      %p33 = scmp.eq.s32.totalorder %s14, 0
      %p34 = por %p32, %p33
      %p35 = scmp.ne.s32.totalorder %s24, %s27
      %p36 = scmp.eq.s32.totalorder %s19, 1
      %p37 = por %p35, %p36
      %p38 = scmp.ne.s32.totalorder %s27, %s28
      %p39 = scmp.eq.s32.totalorder %s19, 0
      %p40 = por %p38, %p39
      %p41 = scmp.ne.s32.totalorder %s27, %s28
      %p42 = scmp.eq.s32.totalorder %s20, 1
      %p43 = por %p41, %p42
      %p45 = scmp.ne.s32.totalorder %s28, %s44
      %p46 = scmp.eq.s32.totalorder %s20, 0
      %p47 = por %p45, %p46
      %s49 = sadd.s32 %s48, 1
      %p52 = scmp.eq.s32.totalorder %s14, 1
      %p53 = scmp.ne.s32.totalorder %s48, %s50
      %p54 = scmp.eq.s32.totalorder %s14, 0
      %p55 = por %p53, %p54
      %p56 = scmp.ne.s32.totalorder %s48, %s50
      %p57 = scmp.eq.s32.totalorder %s19, 1
      %p58 = por %p56, %p57
      %p59 = scmp.ne.s32.totalorder %s50, %s51
      %p60 = scmp.eq.s32.totalorder %s19, 0
      %p61 = por %p59, %p60
      %p62 = scmp.ne.s32.totalorder %s50, %s51
      %p63 = scmp.eq.s32.totalorder %s20, 1
      %p64 = por %p62, %p63
      %p66 = scmp.ne.s32.totalorder %s51, %s65
      %p67 = scmp.eq.s32.totalorder %s20, 0
      %p68 = por %p66, %p67
      %s70 = sadd.s32 %s69, 1
      %p73 = scmp.eq.s32.totalorder %s14, 1
      %p74 = scmp.ne.s32.totalorder %s69, %s71
      %p75 = scmp.eq.s32.totalorder %s14, 0
      %p76 = por %p74, %p75
      %p77 = scmp.ne.s32.totalorder %s69, %s71
      %p78 = scmp.eq.s32.totalorder %s19, 1
      %p79 = por %p77, %p78
      %p80 = scmp.ne.s32.totalorder %s71, %s72
      %p81 = scmp.eq.s32.totalorder %s19, 0
      %p82 = por %p80, %p81
      %p83 = scmp.ne.s32.totalorder %s71, %s72
      %p84 = scmp.eq.s32.totalorder %s20, 1
      %p85 = por %p83, %p84
      %p87 = scmp.ne.s32.totalorder %s72, %s86
      %p88 = scmp.eq.s32.totalorder %s20, 0
      %p89 = por %p87, %p88
      %s91 = sadd.s32 %s90, 1
      %p94 = scmp.eq.s32.totalorder %s14, 1
      %p95 = scmp.ne.s32.totalorder %s90, %s92
      %p96 = scmp.eq.s32.totalorder %s14, 0
      %p97 = por %p95, %p96
      %p98 = scmp.ne.s32.totalorder %s90, %s92
      %p99 = scmp.eq.s32.totalorder %s19, 1
      %p100 = por %p98, %p99
      %p101 = scmp.ne.s32.totalorder %s92, %s93
      %p102 = scmp.eq.s32.totalorder %s19, 0
      %p103 = por %p101, %p102
      %p104 = scmp.ne.s32.totalorder %s92, %s93
      %p105 = scmp.eq.s32.totalorder %s20, 1
      %p106 = por %p104, %p105
      %p108 = scmp.ne.s32.totalorder %s93, %s107
      %p109 = scmp.eq.s32.totalorder %s20, 0
      %p110 = por %p108, %p109
      %s112 = sadd.s32 %s111, 1
      %p115 = scmp.eq.s32.totalorder %s14, 1
      %p116 = scmp.ne.s32.totalorder %s111, %s113
      %p117 = scmp.eq.s32.totalorder %s14, 0
      %p118 = por %p116, %p117
      %p119 = scmp.ne.s32.totalorder %s111, %s113
      %p120 = scmp.eq.s32.totalorder %s19, 1
      %p121 = por %p119, %p120
      %p122 = scmp.ne.s32.totalorder %s113, %s114
      %p123 = scmp.eq.s32.totalorder %s19, 0
      %p124 = por %p122, %p123
      %p125 = scmp.ne.s32.totalorder %s113, %s114
      %p126 = scmp.eq.s32.totalorder %s20, 1
      %p127 = por %p125, %p126
      %p129 = scmp.ne.s32.totalorder %s114, %s128
      %p130 = scmp.eq.s32.totalorder %s20, 0
      %p131 = por %p129, %p130
      %s132 = ssub.s32 %s14, %s21
      %p133 = scmp.eq.s32.totalorder %s132, 0
      %s135 = sadd.s32 %s134, 1
      %s136 = scalar_select %p133, %s134, %s135
      %p139 = pneg %p133
      %p140 = scmp.eq.s32.totalorder %s14, 1
      %p141 = por %p139, %p140
      %p142 = scmp.ne.s32.totalorder %s134, %s137
      %p143 = scmp.eq.s32.totalorder %s14, 0
      %p144 = por %p142, %p143
      %p145 = scmp.ne.s32.totalorder %s134, %s137
      %p146 = scmp.eq.s32.totalorder %s19, 1
      %p147 = por %p145, %p146
      %p148 = scmp.ne.s32.totalorder %s137, %s138
      %p149 = scmp.eq.s32.totalorder %s19, 0
      %p150 = por %p148, %p149
      %p151 = scmp.ne.s32.totalorder %s137, %s138
      %p152 = scmp.eq.s32.totalorder %s20, 1
      %p153 = por %p151, %p152
      %p155 = scmp.ne.s32.totalorder %s138, %s154
      %p156 = scmp.eq.s32.totalorder %s20, 0
      %p157 = por %p155, %p156
      %s158 = ssub.s32 %s14, %s21
      %p159 = scmp.eq.s32.totalorder %s158, 0
      %s161 = sadd.s32 %s160, 1
      %s162 = scalar_select %p159, %s160, %s161
      %p165 = pneg %p159
      %p166 = scmp.eq.s32.totalorder %s14, 1
      %p167 = por %p165, %p166
      %p168 = scmp.ne.s32.totalorder %s160, %s163
      %p169 = scmp.eq.s32.totalorder %s14, 0
      %p170 = por %p168, %p169
      %p171 = scmp.ne.s32.totalorder %s160, %s163
      %p172 = scmp.eq.s32.totalorder %s19, 1
      %p173 = por %p171, %p172
      %p174 = scmp.ne.s32.totalorder %s163, %s164
      %p175 = scmp.eq.s32.totalorder %s19, 0
      %p176 = por %p174, %p175
      %p177 = scmp.ne.s32.totalorder %s163, %s164
      %p178 = scmp.eq.s32.totalorder %s20, 1
      %p179 = por %p177, %p178
      %p181 = scmp.ne.s32.totalorder %s164, %s180
      %p182 = scmp.eq.s32.totalorder %s20, 0
      %p183 = por %p181, %p182
      %s184 = ssub.s32 %s14, %s21
      %p185 = scmp.eq.s32.totalorder %s184, 0
      %s187 = sadd.s32 %s186, 1
      %s188 = scalar_select %p185, %s186, %s187
      %p191 = pneg %p185
      %p192 = scmp.eq.s32.totalorder %s14, 1
      %p193 = por %p191, %p192
      %p194 = scmp.ne.s32.totalorder %s186, %s189
      %p195 = scmp.eq.s32.totalorder %s14, 0
      %p196 = por %p194, %p195
      %p197 = scmp.ne.s32.totalorder %s186, %s189
      %p198 = scmp.eq.s32.totalorder %s19, 1
      %p199 = por %p197, %p198
      %p200 = scmp.ne.s32.totalorder %s189, %s190
      %p201 = scmp.eq.s32.totalorder %s19, 0
      %p202 = por %p200, %p201
      %p203 = scmp.ne.s32.totalorder %s189, %s190
      %p204 = scmp.eq.s32.totalorder %s20, 1
      %p205 = por %p203, %p204
      %p207 = scmp.ne.s32.totalorder %s190, %s206
      %p208 = scmp.eq.s32.totalorder %s20, 0
      %p209 = por %p207, %p208
      %p210 = scmp.le.s32.totalorder 1, %s14
      %p211 = scmp.lt.s32.totalorder %s14, 3
      %p212 = pnand %p210, %p211
      %p213 = pneg %p212
      // Predicated region
      $region9: #{temporal_block_forward.4} parent=5 // pred_check
        _
      $region10: #{temporal_block_forward.4} parent=5 // pred_check_branch
        %215 = sbr.rel (%p212) target = $region12
      $region11: #{temporal_block_forward.4} parent=5 // pred_region
        %s216 = ssub.s32 %s14, 1
        // Predicated region
        $region13: #{temporal_block_forward.4} parent=11 // pred_check
          %p217 = pneg %p61
        $region14: #{temporal_block_forward.4} parent=11 // pred_check_branch
          %219 = sbr.rel (%p217) target = $region16
        $region15: #{temporal_block_forward.4} parent=11 // pred_region
          _
        $region16: #{temporal_block_forward.4} parent=11 // pred_fallthru
          _
        // Predicated region
        $region17: #{temporal_block_forward.4} parent=11 // pred_check
          %p220 = pneg %p82
        $region18: #{temporal_block_forward.4} parent=11 // pred_check_branch
          %222 = sbr.rel (%p220) target = $region20
        $region19: #{temporal_block_forward.4} parent=11 // pred_region
          _
        $region20: #{temporal_block_forward.4} parent=11 // pred_fallthru
          _
        // Predicated region
        $region21: #{temporal_block_forward.4} parent=11 // pred_check
          %p223 = pneg %p103
        $region22: #{temporal_block_forward.4} parent=11 // pred_check_branch
          %225 = sbr.rel (%p223) target = $region24
        $region23: #{temporal_block_forward.4} parent=11 // pred_region
          _
        $region24: #{temporal_block_forward.4} parent=11 // pred_fallthru
          _
        // Predicated region
        $region25: #{temporal_block_forward.4} parent=11 // pred_check
          %p226 = pneg %p124
        $region26: #{temporal_block_forward.4} parent=11 // pred_check_branch
          %228 = sbr.rel (%p226) target = $region28
        $region27: #{temporal_block_forward.4} parent=11 // pred_region
          _
        $region28: #{temporal_block_forward.4} parent=11 // pred_fallthru
          _
      $region12: #{temporal_block_forward.4} parent=5 // pred_fallthru
        _
      %p229 = scmp.lt.s32.totalorder %s14, 2
      // Predicated region
      $region29: #{temporal_block_forward.4} parent=5 // pred_check
        %p230 = pneg %p229
      $region30: #{temporal_block_forward.4} parent=5 // pred_check_branch
        %232 = sbr.rel (%p230) target = $region32
      $region31: #{temporal_block_forward.4} parent=5 // pred_region
        // Predicated region
        $region33: #{temporal_block_forward.4} parent=31 // pred_check
          %p233 = pneg %p34
        $region34: #{temporal_block_forward.4} parent=31 // pred_check_branch
          %235 = sbr.rel (%p233) target = $region36
        $region35: #{temporal_block_forward.4} parent=31 // pred_region
          %s236 = sand.u32 %s24, 1
          %s237 = sand.u32 %s24, 1
          %s238 = smul.addr %s237, 80
          %s239 = scalar_lea.vmem [#allocation2], %s238
          %s240 = smul.u32 2, %s14
          %s241 = smul.addr %s240, 4
          %s242 = scalar_lea.vmem %s0, %s241
          // Predicated region
          $region37: #{temporal_block_forward.4} parent=35 // pred_check
            _
          $region38: #{temporal_block_forward.4} parent=35 // pred_check_branch
            %244 = sbr.rel (0) target = $region40
          $region39: #{temporal_block_forward.4} parent=35 // pred_region
            // Predicated region
            $region41: #{temporal_block_forward.4} parent=39 // pred_check
              _
            $region42: #{temporal_block_forward.4} parent=39 // pred_check_branch
              %246 = sbr.rel (0) target = $region44
            $region43: #{temporal_block_forward.4} parent=39 // pred_region
              // Predicated region
              $region56: #{temporal_block_forward.4} parent=43 // pred_check
                _
              $region57: #{temporal_block_forward.4} parent=43 // pred_check_branch
                %280 = sbr.rel (0) target = $region59
              $region58: #{temporal_block_forward.4} parent=43 // pred_region
                loop: start=0, step=1, limit=1
                $region60: #{temporal_block_forward.4} parent=58 // loop_pre_header
                  _
                $region61: #{temporal_block_forward.4} parent=58 // loop_header
                  %s282 = sphi 0, %s286
                  %p283 = scmp.ge.s32.totalorder %s282, 1
                  %s287 = sphi %s242, %s242
                  %s288 = sphi %s239, %s239
                $region62: #{temporal_block_forward.4} parent=58 // loop_header_branch
                  %285 = sbr.rel (%p283) target = $region66
                $region63: #{temporal_block_forward.4} parent=58 // loop_body
                  %v289 = vld [vmem:[%s287] sm:$0xff]
                  %290 = vst [vmem:[%s288] sm:$0xff] %v289
                  %v291 = vld [vmem:[%s287 + $0x10] sm:$0xff]
                  %292 = vst [vmem:[%s288 + $0x8] sm:$0xff] %v291
                  %v293 = vld [vmem:[%s287 + $0x20] sm:$0xff]
                  %294 = vst [vmem:[%s288 + $0x10] sm:$0xff] %v293
                  %v295 = vld [vmem:[%s287 + $0x30] sm:$0xff]
                  %296 = vst [vmem:[%s288 + $0x18] sm:$0xff] %v295
                  %v297 = vld [vmem:[%s287 + $0x40] sm:$0xff]
                  %298 = vst [vmem:[%s288 + $0x20] sm:$0xff] %v297
                  %v299 = vld [vmem:[%s287 + $0x50] sm:$0xff]
                  %300 = vst [vmem:[%s288 + $0x28] sm:$0xff] %v299
                  %v301 = vld [vmem:[%s287 + $0x60] sm:$0xff]
                  %302 = vst [vmem:[%s288 + $0x30] sm:$0xff] %v301
                  %v303 = vld [vmem:[%s287 + $0x70] sm:$0xff]
                  %304 = vst [vmem:[%s288 + $0x38] sm:$0xff] %v303
                  %v305 = vld [vmem:[%s287 + $0x80] sm:$0xff]
                  %306 = vst [vmem:[%s288 + $0x40] sm:$0xff] %v305
                  %v307 = vld [vmem:[%s287 + $0x90] sm:$0xff]
                  %308 = vst [vmem:[%s288 + $0x48] sm:$0xff] %v307
                $region64: #{temporal_block_forward.4} parent=58 // loop_footer
                  %s286 = sadd.s32 1, %s282
                $region65: #{temporal_block_forward.4} parent=58 // loop_footer_branch
                  %281 = sbr.rel target = $region61
                $region66: #{temporal_block_forward.4} parent=58 // loop_exit
                  _
              $region59: #{temporal_block_forward.4} parent=43 // pred_fallthru
                _
              // Predicated region
              $region67: #{temporal_block_forward.4} parent=43 // pred_check
                _
              $region68: #{temporal_block_forward.4} parent=43 // pred_check_branch
                %310 = sbr.rel target = $region70
              $region69: #{temporal_block_forward.4} parent=43 // pred_region
                _
              $region70: #{temporal_block_forward.4} parent=43 // pred_fallthru
                _
            $region44: #{temporal_block_forward.4} parent=39 // pred_fallthru
              _
            // Predicated region
            $region45: #{temporal_block_forward.4} parent=39 // pred_check
              _
            $region46: #{temporal_block_forward.4} parent=39 // pred_check_branch
              %248 = sbr.rel target = $region48
            $region47: #{temporal_block_forward.4} parent=39 // pred_region
              %s250 = ssub.s32 256, 1
              loop: start=0, step=1, limit=1
              $region49: #{temporal_block_forward.4} parent=47 // loop_pre_header
                _
              $region50: #{temporal_block_forward.4} parent=47 // loop_header
                %s252 = sphi 0, %s256
                %p253 = scmp.ge.s32.totalorder %s252, 1
                %s257 = sphi %s242, %s242
                %s258 = sphi %s239, %s239
              $region51: #{temporal_block_forward.4} parent=47 // loop_header_branch
                %255 = sbr.rel (%p253) target = $region55
              $region52: #{temporal_block_forward.4} parent=47 // loop_body
                %v259 = vld [vmem:[%s257] sm:%s250]
                %260 = vst [vmem:[%s258] sm:%s250] %v259
                %v261 = vld [vmem:[%s257 + $0x10] sm:%s250]
                %262 = vst [vmem:[%s258 + $0x8] sm:%s250] %v261
                %v263 = vld [vmem:[%s257 + $0x20] sm:%s250]
                %264 = vst [vmem:[%s258 + $0x10] sm:%s250] %v263
                %v265 = vld [vmem:[%s257 + $0x30] sm:%s250]
                %266 = vst [vmem:[%s258 + $0x18] sm:%s250] %v265
                %v267 = vld [vmem:[%s257 + $0x40] sm:%s250]
                %268 = vst [vmem:[%s258 + $0x20] sm:%s250] %v267
                %v269 = vld [vmem:[%s257 + $0x50] sm:%s250]
                %270 = vst [vmem:[%s258 + $0x28] sm:%s250] %v269
                %v271 = vld [vmem:[%s257 + $0x60] sm:%s250]
                %272 = vst [vmem:[%s258 + $0x30] sm:%s250] %v271
                %v273 = vld [vmem:[%s257 + $0x70] sm:%s250]
                %274 = vst [vmem:[%s258 + $0x38] sm:%s250] %v273
                %v275 = vld [vmem:[%s257 + $0x80] sm:%s250]
                %276 = vst [vmem:[%s258 + $0x40] sm:%s250] %v275
                %v277 = vld [vmem:[%s257 + $0x90] sm:%s250]
                %278 = vst [vmem:[%s258 + $0x48] sm:%s250] %v277
              $region53: #{temporal_block_forward.4} parent=47 // loop_footer
                %s256 = sadd.s32 1, %s252
              $region54: #{temporal_block_forward.4} parent=47 // loop_footer_branch
                %251 = sbr.rel target = $region50
              $region55: #{temporal_block_forward.4} parent=47 // loop_exit
                _
            $region48: #{temporal_block_forward.4} parent=39 // pred_fallthru
              _
          $region40: #{temporal_block_forward.4} parent=35 // pred_fallthru
            _
          %311 = vnop
        $region36: #{temporal_block_forward.4} parent=31 // pred_fallthru
          _
      $region32: #{temporal_block_forward.4} parent=5 // pred_fallthru
        _
      %p312 = scmp.le.s32.totalorder 1, %s14
      %p313 = scmp.lt.s32.totalorder %s14, 3
      %p314 = pnand %p312, %p313
      %p315 = pneg %p314
      // Predicated region
      $region71: #{temporal_block_forward.4} parent=5 // pred_check
        _
      $region72: #{temporal_block_forward.4} parent=5 // pred_check_branch
        %317 = sbr.rel (%p314) target = $region74
      $region73: #{temporal_block_forward.4} parent=5 // pred_region
        %s318 = ssub.s32 %s14, 1
        %s319 = sand.u32 %s27, 1
        %s320 = sand.u32 %s27, 1
        %s321 = smul.addr %s320, 80
        %s322 = scalar_lea.vmem [#allocation2], %s321
        // Predicated region
        $region75: #{temporal_block_forward.4} parent=73 // pred_check
          %p323 = pneg %p40
        $region76: #{temporal_block_forward.4} parent=73 // pred_check_branch
          %325 = sbr.rel (%p323) target = $region78
        $region77: #{temporal_block_forward.4} parent=73 // pred_region
          _
        $region78: #{temporal_block_forward.4} parent=73 // pred_fallthru
          _
        %s326 = sand.u32 %s27, 1
        %s327 = sand.u32 %s27, 1
        %s328 = smul.addr %s327, 80
        %s329 = scalar_lea.vmem [#allocation2], %s328
        %p330 = pneg %p40
        %p331 = pneg %p37
        %p332 = pneg %p61
        %p333 = pneg %p58
        %p334 = pneg %p82
        %p335 = pneg %p79
        %p336 = pneg %p103
        %p337 = pneg %p100
        %p338 = pneg %p124
        %p339 = pneg %p121
        %p340 = pneg %p150
        %p341 = pneg %p147
        %s342 = sand.u32 %s137, 1
        %s343 = sand.u32 %s137, 1
        %s344 = smul.addr %s343, 80
        %s345 = scalar_lea.vmem [#allocation3], %s344
        %p346 = pneg %p176
        %p347 = pneg %p173
        %p348 = scmp.lt.s32.totalorder %s19, 1
        %s349 = scalar_select %p348, %s19, 1
        %s350 = smul.addr %s349, 8
        %s351 = smul.addr %s350, 8
        %s352 = scalar_lea.vmem %s6, %s351
        %p353 = pneg %p202
        %p354 = pneg %p199
        %p355 = scmp.lt.s32.totalorder %s19, 1
        %s356 = scalar_select %p355, %s19, 1
        %s357 = smul.addr %s356, 8
        %s358 = smul.addr %s357, 8
        %s359 = scalar_lea.vmem %s7, %s358
        %s360 = smul.u32 2, %s19
        %s361 = smul.u32 2, %s19
        %p362 = scmp.lt.s32.totalorder %s19, 1
        %s363 = scalar_select %p362, %s19, 1
        %s364 = smul.addr %s363, 8
        %s365 = smul.addr %s364, 8
        %s366 = scalar_lea.vmem %s6, %s365
        %p367 = scmp.lt.s32.totalorder %s19, 1
        %s368 = scalar_select %p367, %s19, 1
        %s369 = smul.addr %s368, 8
        %s370 = smul.addr %s369, 8
        %s371 = scalar_lea.vmem %s7, %s370
        %v373 = vld [vmem:[%s1] sm:$0xf]
        %v374 = vld [vmem:[%s1 + $0x4] sm:$0xf]
        %v375 = vld [vmem:[%s1 + $0x8] sm:$0xf]
        %v376 = vld [vmem:[%s1 + $0xc] sm:$0xf]
        %v377 = vld [vmem:[%s1 + $0x10] sm:$0xf]
        %v378 = vld [vmem:[%s1 + $0x14] sm:$0xf]
        %v379 = vld [vmem:[%s1 + $0x18] sm:$0xf]
        %v380 = vld [vmem:[%s1 + $0x1c] sm:$0xf]
        %v381 = vld [vmem:[%s2] sm:$0xff]
        %v382 = vld [vmem:[%s2 + $0x8] sm:$0xff]
        %v383 = vld [vmem:[%s2 + $0x10] sm:$0xff]
        %v384 = vld [vmem:[%s2 + $0x18] sm:$0xff]
        %v385 = vld [vmem:[%s2 + $0x20] sm:$0xff]
        %v386 = vld [vmem:[%s2 + $0x28] sm:$0xff]
        %v387 = vld [vmem:[%s2 + $0x30] sm:$0xff]
        %v388 = vld [vmem:[%s2 + $0x38] sm:$0xff]
        %v389 = vld [vmem:[%s3] sm:$0xff]
        %v390 = vld [vmem:[%s3 + $0x8] sm:$0xff]
        %v391 = vld [vmem:[%s3 + $0x10] sm:$0xff]
        %v392 = vld [vmem:[%s3 + $0x18] sm:$0xff]
        %v393 = vld [vmem:[%s3 + $0x20] sm:$0xff]
        %v394 = vld [vmem:[%s3 + $0x28] sm:$0xff]
        %v395 = vld [vmem:[%s3 + $0x30] sm:$0xff]
        %v396 = vld [vmem:[%s3 + $0x38] sm:$0xff]
        %s397 = smul.u32 %s19, 256
        %v398 = vlaneseq
        %v399 = vand.u32 %v398, 127
        %v400 = vadd.s32 %v399, 128
        %v401 = vstv %s397
        %v402 = vadd.s32 %v401, %v399
        %v403 = vadd.s32 %v401, %v400
        %vm404 = vcmp.lt.s32.totalorder %v402, 480
        %vm405 = vcmp.lt.s32.totalorder %v403, 480
        %406 = vst [vmem:[%s345] sm:$0xff] 0
        %407 = vst [vmem:[%s345 + $0x48] sm:$0xff] 0
        %v408 = vld [vmem:[%s322] sm:$0xff]
        %v409 = vld [vmem:[%s322 + $0x8] sm:$0xff]
        %v410 = vld [vmem:[%s322 + $0x10] sm:$0xff]
        %v411 = vld [vmem:[%s322 + $0x18] sm:$0xff]
        %v412 = vld [vmem:[%s322 + $0x20] sm:$0xff]
        %v413 = vld [vmem:[%s322 + $0x28] sm:$0xff]
        %v414 = vld [vmem:[%s322 + $0x30] sm:$0xff]
        %v415 = vld [vmem:[%s322 + $0x38] sm:$0xff]
        %v416 = vld [vmem:[%s322 + $0x40] sm:$0xff]
        %v417 = vld [vmem:[%s322 + $0x48] sm:$0xff]
        %v426 = vunpack.c.l.b16 %v373
        %v427 = vunpack.c.l.b16 %v374
        %v428 = vunpack.c.l.b16 %v375
        %v429 = vunpack.c.l.b16 %v376
        %v430 = vunpack.c.l.b16 %v377
        %v431 = vunpack.c.l.b16 %v378
        %v432 = vunpack.c.l.b16 %v379
        %v433 = vunpack.c.l.b16 %v380
        %v434 = vpack.c.b16 %v427, %v426
        %v435 = vpack.c.b16 %v429, %v428
        %v436 = vpack.c.b16 %v431, %v430
        %v437 = vpack.c.b16 %v433, %v432
        %v448 = vunpack.c.l.b16 %v408
        %v449 = vunpack.c.h.b16 %v408
        %v450 = vunpack.c.l.b16 %v409
        %v451 = vunpack.c.h.b16 %v409
        %v452 = vunpack.c.l.b16 %v410
        %v453 = vunpack.c.h.b16 %v410
        %v454 = vunpack.c.l.b16 %v411
        %v455 = vunpack.c.h.b16 %v411
        %v456 = vunpack.c.l.b16 %v412
        %v457 = vunpack.c.h.b16 %v412
        %v458 = vunpack.c.l.b16 %v413
        %v459 = vunpack.c.h.b16 %v413
        %v460 = vunpack.c.l.b16 %v414
        %v461 = vunpack.c.h.b16 %v414
        %v462 = vunpack.c.l.b16 %v415
        %v463 = vunpack.c.h.b16 %v415
        %v464 = vunpack.c.l.b16 %v416
        %v465 = vunpack.c.h.b16 %v416
        %v466 = vunpack.c.l.b16 %v417
        %v467 = vunpack.c.h.b16 %v417
        %v468 = vpack.c.b16 %v450, %v448
        %v469 = vpack.c.b16 %v451, %v449
        %v470 = vpack.c.b16 %v454, %v452
        %v471 = vpack.c.b16 %v455, %v453
        %v472 = vpack.c.b16 %v458, %v456
        %v473 = vpack.c.b16 %v459, %v457
        %v474 = vpack.c.b16 %v462, %v460
        %v475 = vpack.c.b16 %v463, %v461
        %v476 = vpack.c.b16 %v466, %v464
        %v477 = vpack.c.b16 %v467, %v465
        %vm488 = vcmask 654336
        %v490 = vsel %vm488, %v434, 0
        %v493 = vsel %vm488, %v435, 0
        %v496 = vsel %vm488, %v436, 0
        %v499 = vsel %vm488, %v437, 0
        %501 = vmatpush.bf16.msra.mxu0 0
        %502 = vmatpush.bf16.msra.mxu0 0
        %503 = vmatpush.bf16.msra.mxu0 0
        %504 = vmatpush.bf16.msra.mxu0 %v476
        %505 = vmatpush.bf16.msra.mxu0 %v474
        %506 = vmatpush.bf16.msra.mxu0 %v472
        %507 = vmatpush.bf16.msra.mxu0 %v470
        %508 = vmatpush.bf16.msra.mxu0 %v468
        %509 = vmatmul.bf16.gmra.mxu0 %v490
        %v510 = vpop.f32.mrf.mxu0
        %v511 = vadd.f32 0.0, %v510
        %v512 = vpop.f32.mrf.mxu0
        %v513 = vadd.f32 0.0, %v512
        %514 = vmatmul.bf16.gmra.mxu0 %v493
        %v515 = vpop.f32.mrf.mxu0
        %v516 = vadd.f32 0.0, %v515
        %v517 = vpop.f32.mrf.mxu0
        %v518 = vadd.f32 0.0, %v517
        %519 = vmatmul.bf16.gmra.mxu0 %v496
        %v520 = vpop.f32.mrf.mxu0
        %v521 = vadd.f32 0.0, %v520
        %v522 = vpop.f32.mrf.mxu0
        %v523 = vadd.f32 0.0, %v522
        %524 = vmatmul.bf16.gmra.mxu0 %v499
        %v525 = vpop.f32.mrf.mxu0
        %v526 = vadd.f32 0.0, %v525
        %v527 = vpop.f32.mrf.mxu0
        %v528 = vadd.f32 0.0, %v527
        %529 = vdwg.mxu0
        %530 = vmatpush.bf16.msra.mxu0 0
        %531 = vmatpush.bf16.msra.mxu0 0
        %532 = vmatpush.bf16.msra.mxu0 0
        %533 = vmatpush.bf16.msra.mxu0 %v477
        %534 = vmatpush.bf16.msra.mxu0 %v475
        %535 = vmatpush.bf16.msra.mxu0 %v473
        %536 = vmatpush.bf16.msra.mxu0 %v471
        %537 = vmatpush.bf16.msra.mxu0 %v469
        %538 = vmatmul.bf16.gmra.mxu0 %v490
        %v539 = vpop.f32.mrf.mxu0
        %v540 = vadd.f32 0.0, %v539
        %v541 = vpop.f32.mrf.mxu0
        %v542 = vadd.f32 0.0, %v541
        %543 = vmatmul.bf16.gmra.mxu0 %v493
        %v544 = vpop.f32.mrf.mxu0
        %v545 = vadd.f32 0.0, %v544
        %v546 = vpop.f32.mrf.mxu0
        %v547 = vadd.f32 0.0, %v546
        %548 = vmatmul.bf16.gmra.mxu0 %v496
        %v549 = vpop.f32.mrf.mxu0
        %v550 = vadd.f32 0.0, %v549
        %v551 = vpop.f32.mrf.mxu0
        %v552 = vadd.f32 0.0, %v551
        %553 = vmatmul.bf16.gmra.mxu0 %v499
        %v554 = vpop.f32.mrf.mxu0
        %v555 = vadd.f32 0.0, %v554
        %v556 = vpop.f32.mrf.mxu0
        %v557 = vadd.f32 0.0, %v556
        %558 = vdwg.mxu0
        %560 = vset.pattern.permute.xlu0 0
        %561 = vperm.xlu0 %560, %v381
        %v562 = vpop.permute.xlu0 %561
        %565 = vset.pattern.permute.xlu0 0
        %566 = vperm.xlu0 %565, %v382
        %v567 = vpop.permute.xlu0 %566
        %570 = vset.pattern.permute.xlu0 0
        %571 = vperm.xlu0 %570, %v383
        %v572 = vpop.permute.xlu0 %571
        %575 = vset.pattern.permute.xlu0 0
        %576 = vperm.xlu0 %575, %v384
        %v577 = vpop.permute.xlu0 %576
        %580 = vset.pattern.permute.xlu0 0
        %581 = vperm.xlu0 %580, %v385
        %v582 = vpop.permute.xlu0 %581
        %585 = vset.pattern.permute.xlu0 0
        %586 = vperm.xlu0 %585, %v386
        %v587 = vpop.permute.xlu0 %586
        %590 = vset.pattern.permute.xlu0 0
        %591 = vperm.xlu0 %590, %v387
        %v592 = vpop.permute.xlu0 %591
        %595 = vset.pattern.permute.xlu0 0
        %596 = vperm.xlu0 %595, %v388
        %v597 = vpop.permute.xlu0 %596
        %v599 = vmul.f32 %v511, %v562
        %v600 = vmul.f32 %v540, %v562
        %v601 = vmul.f32 %v513, %v567
        %v602 = vmul.f32 %v542, %v567
        %v603 = vmul.f32 %v516, %v572
        %v604 = vmul.f32 %v545, %v572
        %v605 = vmul.f32 %v518, %v577
        %v606 = vmul.f32 %v547, %v577
        %v607 = vmul.f32 %v521, %v582
        %v608 = vmul.f32 %v550, %v582
        %v609 = vmul.f32 %v523, %v587
        %v610 = vmul.f32 %v552, %v587
        %v611 = vmul.f32 %v526, %v592
        %v612 = vmul.f32 %v555, %v592
        %v613 = vmul.f32 %v528, %v597
        %v614 = vmul.f32 %v557, %v597
        %616 = vset.pattern.permute.xlu0 0
        %617 = vperm.xlu0 %616, %v389
        %v618 = vpop.permute.xlu0 %617
        %621 = vset.pattern.permute.xlu0 0
        %622 = vperm.xlu0 %621, %v390
        %v623 = vpop.permute.xlu0 %622
        %626 = vset.pattern.permute.xlu0 0
        %627 = vperm.xlu0 %626, %v391
        %v628 = vpop.permute.xlu0 %627
        %631 = vset.pattern.permute.xlu0 0
        %632 = vperm.xlu0 %631, %v392
        %v633 = vpop.permute.xlu0 %632
        %636 = vset.pattern.permute.xlu0 0
        %637 = vperm.xlu0 %636, %v393
        %v638 = vpop.permute.xlu0 %637
        %641 = vset.pattern.permute.xlu0 0
        %642 = vperm.xlu0 %641, %v394
        %v643 = vpop.permute.xlu0 %642
        %646 = vset.pattern.permute.xlu0 0
        %647 = vperm.xlu0 %646, %v395
        %v648 = vpop.permute.xlu0 %647
        %651 = vset.pattern.permute.xlu0 0
        %652 = vperm.xlu0 %651, %v396
        %v653 = vpop.permute.xlu0 %652
        %v655 = vadd.f32 %v599, %v618
        %v656 = vadd.f32 %v600, %v618
        %v657 = vadd.f32 %v601, %v623
        %v658 = vadd.f32 %v602, %v623
        %v659 = vadd.f32 %v603, %v628
        %v660 = vadd.f32 %v604, %v628
        %v661 = vadd.f32 %v605, %v633
        %v662 = vadd.f32 %v606, %v633
        %v663 = vadd.f32 %v607, %v638
        %v664 = vadd.f32 %v608, %v638
        %v665 = vadd.f32 %v609, %v643
        %v666 = vadd.f32 %v610, %v643
        %v667 = vadd.f32 %v611, %v648
        %v668 = vadd.f32 %v612, %v648
        %v669 = vadd.f32 %v613, %v653
        %v670 = vadd.f32 %v614, %v653
        %vm671 = vcmp.ge.f32.partialorder %v655, 0.0
        %vm672 = vcmp.ge.f32.partialorder %v656, 0.0
        %vm673 = vcmp.ge.f32.partialorder %v657, 0.0
        %vm674 = vcmp.ge.f32.partialorder %v658, 0.0
        %vm675 = vcmp.ge.f32.partialorder %v659, 0.0
        %vm676 = vcmp.ge.f32.partialorder %v660, 0.0
        %vm677 = vcmp.ge.f32.partialorder %v661, 0.0
        %vm678 = vcmp.ge.f32.partialorder %v662, 0.0
        %vm679 = vcmp.ge.f32.partialorder %v663, 0.0
        %vm680 = vcmp.ge.f32.partialorder %v664, 0.0
        %vm681 = vcmp.ge.f32.partialorder %v665, 0.0
        %vm682 = vcmp.ge.f32.partialorder %v666, 0.0
        %vm683 = vcmp.ge.f32.partialorder %v667, 0.0
        %vm684 = vcmp.ge.f32.partialorder %v668, 0.0
        %vm685 = vcmp.ge.f32.partialorder %v669, 0.0
        %vm686 = vcmp.ge.f32.partialorder %v670, 0.0
        %v687 = vmul.f32 %v655, 0.01
        %v688 = vmul.f32 %v656, 0.01
        %v689 = vmul.f32 %v657, 0.01
        %v690 = vmul.f32 %v658, 0.01
        %v691 = vmul.f32 %v659, 0.01
        %v692 = vmul.f32 %v660, 0.01
        %v693 = vmul.f32 %v661, 0.01
        %v694 = vmul.f32 %v662, 0.01
        %v695 = vmul.f32 %v663, 0.01
        %v696 = vmul.f32 %v664, 0.01
        %v697 = vmul.f32 %v665, 0.01
        %v698 = vmul.f32 %v666, 0.01
        %v699 = vmul.f32 %v667, 0.01
        %v700 = vmul.f32 %v668, 0.01
        %v701 = vmul.f32 %v669, 0.01
        %v702 = vmul.f32 %v670, 0.01
        %v703 = vsel %vm671, %v655, %v687
        %v704 = vsel %vm672, %v656, %v688
        %v705 = vsel %vm673, %v657, %v689
        %v706 = vsel %vm674, %v658, %v690
        %v707 = vsel %vm675, %v659, %v691
        %v708 = vsel %vm676, %v660, %v692
        %v709 = vsel %vm677, %v661, %v693
        %v710 = vsel %vm678, %v662, %v694
        %v711 = vsel %vm679, %v663, %v695
        %v712 = vsel %vm680, %v664, %v696
        %v713 = vsel %vm681, %v665, %v697
        %v714 = vsel %vm682, %v666, %v698
        %v715 = vsel %vm683, %v667, %v699
        %v716 = vsel %vm684, %v668, %v700
        %v717 = vsel %vm685, %v669, %v701
        %v718 = vsel %vm686, %v670, %v702
        %v719 = vsel %vm404, 1, 0
        %v720 = vsel %vm405, 1, 0
        %vm721 = vcmp.eq.s32.totalorder %v719, 1
        %vm722 = vcmp.eq.s32.totalorder %v720, 1
        %v723 = vsel %vm721, %v703, 0.0
        %v724 = vsel %vm722, %v704, 0.0
        %v725 = vsel %vm721, %v705, 0.0
        %v726 = vsel %vm722, %v706, 0.0
        %v727 = vsel %vm721, %v707, 0.0
        %v728 = vsel %vm722, %v708, 0.0
        %v729 = vsel %vm721, %v709, 0.0
        %v730 = vsel %vm722, %v710, 0.0
        %v731 = vsel %vm721, %v711, 0.0
        %v732 = vsel %vm722, %v712, 0.0
        %v733 = vsel %vm721, %v713, 0.0
        %v734 = vsel %vm722, %v714, 0.0
        %v735 = vsel %vm721, %v715, 0.0
        %v736 = vsel %vm722, %v716, 0.0
        %v737 = vsel %vm721, %v717, 0.0
        %v738 = vsel %vm722, %v718, 0.0
        %v739 = vpack.c.bf16 %v724, %v723
        %v740 = vpack.c.bf16 %v726, %v725
        %v741 = vpack.c.bf16 %v728, %v727
        %v742 = vpack.c.bf16 %v730, %v729
        %v743 = vpack.c.bf16 %v732, %v731
        %v744 = vpack.c.bf16 %v734, %v733
        %v745 = vpack.c.bf16 %v736, %v735
        %v746 = vpack.c.bf16 %v738, %v737
        %747 = vst [vmem:[%s345 + $0x8] sm:$0xff] %v739
        %748 = vst [vmem:[%s345 + $0x10] sm:$0xff] %v740
        %749 = vst [vmem:[%s345 + $0x18] sm:$0xff] %v741
        %750 = vst [vmem:[%s345 + $0x20] sm:$0xff] %v742
        %751 = vst [vmem:[%s345 + $0x28] sm:$0xff] %v743
        %752 = vst [vmem:[%s345 + $0x30] sm:$0xff] %v744
        %753 = vst [vmem:[%s345 + $0x38] sm:$0xff] %v745
        %754 = vst [vmem:[%s345 + $0x40] sm:$0xff] %v746
        %v755 = vld [vmem:[%s4] sm:$0xf]
        %v756 = vld [vmem:[%s4 + $0x4] sm:$0xf]
        %v757 = vld [vmem:[%s4 + $0x8] sm:$0xf]
        %v758 = vld [vmem:[%s4 + $0xc] sm:$0xf]
        %v759 = vld [vmem:[%s4 + $0x10] sm:$0xf]
        %v760 = vld [vmem:[%s4 + $0x14] sm:$0xf]
        %v761 = vld [vmem:[%s4 + $0x18] sm:$0xf]
        %v762 = vld [vmem:[%s4 + $0x1c] sm:$0xf]
        %v763 = vld [vmem:[%s345] sm:$0xff]
        %v764 = vld [vmem:[%s345 + $0x8] sm:$0xff]
        %v765 = vld [vmem:[%s345 + $0x10] sm:$0xff]
        %v766 = vld [vmem:[%s345 + $0x18] sm:$0xff]
        %v767 = vld [vmem:[%s345 + $0x20] sm:$0xff]
        %v768 = vld [vmem:[%s345 + $0x28] sm:$0xff]
        %v769 = vld [vmem:[%s345 + $0x30] sm:$0xff]
        %v770 = vld [vmem:[%s345 + $0x38] sm:$0xff]
        %v771 = vld [vmem:[%s345 + $0x40] sm:$0xff]
        %v772 = vld [vmem:[%s345 + $0x48] sm:$0xff]
        %v781 = vunpack.c.l.b16 %v755
        %v782 = vunpack.c.l.b16 %v756
        %v783 = vunpack.c.l.b16 %v757
        %v784 = vunpack.c.l.b16 %v758
        %v785 = vunpack.c.l.b16 %v759
        %v786 = vunpack.c.l.b16 %v760
        %v787 = vunpack.c.l.b16 %v761
        %v788 = vunpack.c.l.b16 %v762
        %v789 = vpack.c.b16 %v782, %v781
        %v790 = vpack.c.b16 %v784, %v783
        %v791 = vpack.c.b16 %v786, %v785
        %v792 = vpack.c.b16 %v788, %v787
        %v803 = vunpack.c.l.b16 %v763
        %v804 = vunpack.c.h.b16 %v763
        %v805 = vunpack.c.l.b16 %v764
        %v806 = vunpack.c.h.b16 %v764
        %v807 = vunpack.c.l.b16 %v765
        %v808 = vunpack.c.h.b16 %v765
        %v809 = vunpack.c.l.b16 %v766
        %v810 = vunpack.c.h.b16 %v766
        %v811 = vunpack.c.l.b16 %v767
        %v812 = vunpack.c.h.b16 %v767
        %v813 = vunpack.c.l.b16 %v768
        %v814 = vunpack.c.h.b16 %v768
        %v815 = vunpack.c.l.b16 %v769
        %v816 = vunpack.c.h.b16 %v769
        %v817 = vunpack.c.l.b16 %v770
        %v818 = vunpack.c.h.b16 %v770
        %v819 = vunpack.c.l.b16 %v771
        %v820 = vunpack.c.h.b16 %v771
        %v821 = vunpack.c.l.b16 %v772
        %v822 = vunpack.c.h.b16 %v772
        %v823 = vpack.c.b16 %v805, %v803
        %v824 = vpack.c.b16 %v806, %v804
        %v825 = vpack.c.b16 %v809, %v807
        %v826 = vpack.c.b16 %v810, %v808
        %v827 = vpack.c.b16 %v813, %v811
        %v828 = vpack.c.b16 %v814, %v812
        %v829 = vpack.c.b16 %v817, %v815
        %v830 = vpack.c.b16 %v818, %v816
        %v831 = vpack.c.b16 %v821, %v819
        %v832 = vpack.c.b16 %v822, %v820
        %v844 = vsel %vm488, %v789, 0
        %v847 = vsel %vm488, %v790, 0
        %v850 = vsel %vm488, %v791, 0
        %v853 = vsel %vm488, %v792, 0
        %855 = vmatpush.bf16.msra.mxu0 0
        %856 = vmatpush.bf16.msra.mxu0 0
        %857 = vmatpush.bf16.msra.mxu0 0
        %858 = vmatpush.bf16.msra.mxu0 %v831
        %859 = vmatpush.bf16.msra.mxu0 %v829
        %860 = vmatpush.bf16.msra.mxu0 %v827
        %861 = vmatpush.bf16.msra.mxu0 %v825
        %862 = vmatpush.bf16.msra.mxu0 %v823
        %863 = vmatmul.bf16.gmra.mxu0 %v844
        %v864 = vpop.f32.mrf.mxu0
        %v865 = vadd.f32 0.0, %v864
        %v866 = vpop.f32.mrf.mxu0
        %v867 = vadd.f32 0.0, %v866
        %868 = vmatmul.bf16.gmra.mxu0 %v847
        %v869 = vpop.f32.mrf.mxu0
        %v870 = vadd.f32 0.0, %v869
        %v871 = vpop.f32.mrf.mxu0
        %v872 = vadd.f32 0.0, %v871
        %873 = vmatmul.bf16.gmra.mxu0 %v850
        %v874 = vpop.f32.mrf.mxu0
        %v875 = vadd.f32 0.0, %v874
        %v876 = vpop.f32.mrf.mxu0
        %v877 = vadd.f32 0.0, %v876
        %878 = vmatmul.bf16.gmra.mxu0 %v853
        %v879 = vpop.f32.mrf.mxu0
        %v880 = vadd.f32 0.0, %v879
        %v881 = vpop.f32.mrf.mxu0
        %v882 = vadd.f32 0.0, %v881
        %883 = vdwg.mxu0
        %884 = vmatpush.bf16.msra.mxu0 0
        %885 = vmatpush.bf16.msra.mxu0 0
        %886 = vmatpush.bf16.msra.mxu0 0
        %887 = vmatpush.bf16.msra.mxu0 %v832
        %888 = vmatpush.bf16.msra.mxu0 %v830
        %889 = vmatpush.bf16.msra.mxu0 %v828
        %890 = vmatpush.bf16.msra.mxu0 %v826
        %891 = vmatpush.bf16.msra.mxu0 %v824
        %892 = vmatmul.bf16.gmra.mxu0 %v844
        %v893 = vpop.f32.mrf.mxu0
        %v894 = vadd.f32 0.0, %v893
        %v895 = vpop.f32.mrf.mxu0
        %v896 = vadd.f32 0.0, %v895
        %897 = vmatmul.bf16.gmra.mxu0 %v847
        %v898 = vpop.f32.mrf.mxu0
        %v899 = vadd.f32 0.0, %v898
        %v900 = vpop.f32.mrf.mxu0
        %v901 = vadd.f32 0.0, %v900
        %902 = vmatmul.bf16.gmra.mxu0 %v850
        %v903 = vpop.f32.mrf.mxu0
        %v904 = vadd.f32 0.0, %v903
        %v905 = vpop.f32.mrf.mxu0
        %v906 = vadd.f32 0.0, %v905
        %907 = vmatmul.bf16.gmra.mxu0 %v853
        %v908 = vpop.f32.mrf.mxu0
        %v909 = vadd.f32 0.0, %v908
        %v910 = vpop.f32.mrf.mxu0
        %v911 = vadd.f32 0.0, %v910
        %912 = vdwg.mxu0
        %v913 = vadd.f32 %v865, %v894
        %914 = vadd.xlane.f32.xlu0 %v913
        %v915 = vpop.xlane.xlu0 %914
        %v916 = vadd.f32 %v867, %v896
        %917 = vadd.xlane.f32.xlu0 %v916
        %v918 = vpop.xlane.xlu0 %917
        %v919 = vadd.f32 %v870, %v899
        %920 = vadd.xlane.f32.xlu0 %v919
        %v921 = vpop.xlane.xlu0 %920
        %v922 = vadd.f32 %v872, %v901
        %923 = vadd.xlane.f32.xlu0 %v922
        %v924 = vpop.xlane.xlu0 %923
        %v925 = vadd.f32 %v875, %v904
        %926 = vadd.xlane.f32.xlu0 %v925
        %v927 = vpop.xlane.xlu0 %926
        %v928 = vadd.f32 %v877, %v906
        %929 = vadd.xlane.f32.xlu0 %v928
        %v930 = vpop.xlane.xlu0 %929
        %v931 = vadd.f32 %v880, %v909
        %932 = vadd.xlane.f32.xlu0 %v931
        %v933 = vpop.xlane.xlu0 %932
        %v934 = vadd.f32 %v882, %v911
        %935 = vadd.xlane.f32.xlu0 %v934
        %v936 = vpop.xlane.xlu0 %935
        %vm937 = vcmask 7168
        %938 = vst.msk [vmem:[%s366] sm:$0xff] %vm937, %v915
        %939 = vst.msk [vmem:[%s366 + $0x8] sm:$0xff] %vm937, %v918
        %940 = vst.msk [vmem:[%s366 + $0x10] sm:$0xff] %vm937, %v921
        %941 = vst.msk [vmem:[%s366 + $0x18] sm:$0xff] %vm937, %v924
        %942 = vst.msk [vmem:[%s366 + $0x20] sm:$0xff] %vm937, %v927
        %943 = vst.msk [vmem:[%s366 + $0x28] sm:$0xff] %vm937, %v930
        %944 = vst.msk [vmem:[%s366 + $0x30] sm:$0xff] %vm937, %v933
        %945 = vst.msk [vmem:[%s366 + $0x38] sm:$0xff] %vm937, %v936
        %v946 = vmul.f32 %v865, %v865
        %v947 = vmul.f32 %v894, %v894
        %v948 = vmul.f32 %v867, %v867
        %v949 = vmul.f32 %v896, %v896
        %v950 = vmul.f32 %v870, %v870
        %v951 = vmul.f32 %v899, %v899
        %v952 = vmul.f32 %v872, %v872
        %v953 = vmul.f32 %v901, %v901
        %v954 = vmul.f32 %v875, %v875
        %v955 = vmul.f32 %v904, %v904
        %v956 = vmul.f32 %v877, %v877
        %v957 = vmul.f32 %v906, %v906
        %v958 = vmul.f32 %v880, %v880
        %v959 = vmul.f32 %v909, %v909
        %v960 = vmul.f32 %v882, %v882
        %v961 = vmul.f32 %v911, %v911
        %v962 = vadd.f32 %v946, %v947
        %963 = vadd.xlane.f32.xlu0 %v962
        %v964 = vpop.xlane.xlu0 %963
        %v965 = vadd.f32 %v948, %v949
        %966 = vadd.xlane.f32.xlu0 %v965
        %v967 = vpop.xlane.xlu0 %966
        %v968 = vadd.f32 %v950, %v951
        %969 = vadd.xlane.f32.xlu0 %v968
        %v970 = vpop.xlane.xlu0 %969
        %v971 = vadd.f32 %v952, %v953
        %972 = vadd.xlane.f32.xlu0 %v971
        %v973 = vpop.xlane.xlu0 %972
        %v974 = vadd.f32 %v954, %v955
        %975 = vadd.xlane.f32.xlu0 %v974
        %v976 = vpop.xlane.xlu0 %975
        %v977 = vadd.f32 %v956, %v957
        %978 = vadd.xlane.f32.xlu0 %v977
        %v979 = vpop.xlane.xlu0 %978
        %v980 = vadd.f32 %v958, %v959
        %981 = vadd.xlane.f32.xlu0 %v980
        %v982 = vpop.xlane.xlu0 %981
        %v983 = vadd.f32 %v960, %v961
        %984 = vadd.xlane.f32.xlu0 %v983
        %v985 = vpop.xlane.xlu0 %984
        %986 = vst.msk [vmem:[%s371] sm:$0xff] %vm937, %v964
        %987 = vst.msk [vmem:[%s371 + $0x8] sm:$0xff] %vm937, %v967
        %988 = vst.msk [vmem:[%s371 + $0x10] sm:$0xff] %vm937, %v970
        %989 = vst.msk [vmem:[%s371 + $0x18] sm:$0xff] %vm937, %v973
        %990 = vst.msk [vmem:[%s371 + $0x20] sm:$0xff] %vm937, %v976
        %991 = vst.msk [vmem:[%s371 + $0x28] sm:$0xff] %vm937, %v979
        %992 = vst.msk [vmem:[%s371 + $0x30] sm:$0xff] %vm937, %v982
        %993 = vst.msk [vmem:[%s371 + $0x38] sm:$0xff] %vm937, %v985
        %s994 = sand.u32 %s137, 1
        %s995 = sand.u32 %s137, 1
        %s996 = smul.addr %s995, 80
        %s997 = scalar_lea.vmem [#allocation3], %s996
        %p998 = scmp.lt.s32.totalorder %s19, 1
        %s999 = scalar_select %p998, %s19, 1
        %s1000 = smul.addr %s999, 8
        %s1001 = smul.addr %s1000, 8
        %s1002 = scalar_lea.vmem %s6, %s1001
        %p1003 = scmp.lt.s32.totalorder %s19, 1
        %s1004 = scalar_select %p1003, %s19, 1
        %s1005 = smul.addr %s1004, 8
        %s1006 = smul.addr %s1005, 8
        %s1007 = scalar_lea.vmem %s7, %s1006
        // Predicated region
        $region79: #{temporal_block_forward.4} parent=73 // pred_check
          %p1008 = pneg %p147
        $region80: #{temporal_block_forward.4} parent=73 // pred_check_branch
          %1010 = sbr.rel (%p1008) target = $region82
        $region81: #{temporal_block_forward.4} parent=73 // pred_region
          %s1011 = smul.u32 2, %s19
          %s1012 = smul.addr %s1011, 4
          %s1013 = scalar_lea.vmem %s5, %s1012
          // Predicated region
          $region83: #{temporal_block_forward.4} parent=81 // pred_check
            _
          $region84: #{temporal_block_forward.4} parent=81 // pred_check_branch
            %1015 = sbr.rel (0) target = $region86
          $region85: #{temporal_block_forward.4} parent=81 // pred_region
            // Predicated region
            $region87: #{temporal_block_forward.4} parent=85 // pred_check
              _
            $region88: #{temporal_block_forward.4} parent=85 // pred_check_branch
              %1017 = sbr.rel (0) target = $region90
            $region89: #{temporal_block_forward.4} parent=85 // pred_region
              // Predicated region
              $region102: #{temporal_block_forward.4} parent=89 // pred_check
                _
              $region103: #{temporal_block_forward.4} parent=89 // pred_check_branch
                %1051 = sbr.rel (0) target = $region105
              $region104: #{temporal_block_forward.4} parent=89 // pred_region
                loop: start=0, step=1, limit=1
                $region106: #{temporal_block_forward.4} parent=104 // loop_pre_header
                  _
                $region107: #{temporal_block_forward.4} parent=104 // loop_header
                  %s1053 = sphi 0, %s1057
                  %p1054 = scmp.ge.s32.totalorder %s1053, 1
                  %s1058 = sphi %s997, %s997
                  %s1059 = sphi %s1013, %s1013
                $region108: #{temporal_block_forward.4} parent=104 // loop_header_branch
                  %1056 = sbr.rel (%p1054) target = $region112
                $region109: #{temporal_block_forward.4} parent=104 // loop_body
                  %v1060 = vld [vmem:[%s1058] sm:$0xff]
                  %1061 = vst [vmem:[%s1059] sm:$0xff] %v1060
                  %v1062 = vld [vmem:[%s1058 + $0x8] sm:$0xff]
                  %1063 = vst [vmem:[%s1059 + $0x10] sm:$0xff] %v1062
                  %v1064 = vld [vmem:[%s1058 + $0x10] sm:$0xff]
                  %1065 = vst [vmem:[%s1059 + $0x20] sm:$0xff] %v1064
                  %v1066 = vld [vmem:[%s1058 + $0x18] sm:$0xff]
                  %1067 = vst [vmem:[%s1059 + $0x30] sm:$0xff] %v1066
                  %v1068 = vld [vmem:[%s1058 + $0x20] sm:$0xff]
                  %1069 = vst [vmem:[%s1059 + $0x40] sm:$0xff] %v1068
                  %v1070 = vld [vmem:[%s1058 + $0x28] sm:$0xff]
                  %1071 = vst [vmem:[%s1059 + $0x50] sm:$0xff] %v1070
                  %v1072 = vld [vmem:[%s1058 + $0x30] sm:$0xff]
                  %1073 = vst [vmem:[%s1059 + $0x60] sm:$0xff] %v1072
                  %v1074 = vld [vmem:[%s1058 + $0x38] sm:$0xff]
                  %1075 = vst [vmem:[%s1059 + $0x70] sm:$0xff] %v1074
                  %v1076 = vld [vmem:[%s1058 + $0x40] sm:$0xff]
                  %1077 = vst [vmem:[%s1059 + $0x80] sm:$0xff] %v1076
                  %v1078 = vld [vmem:[%s1058 + $0x48] sm:$0xff]
                  %1079 = vst [vmem:[%s1059 + $0x90] sm:$0xff] %v1078
                $region110: #{temporal_block_forward.4} parent=104 // loop_footer
                  %s1057 = sadd.s32 1, %s1053
                $region111: #{temporal_block_forward.4} parent=104 // loop_footer_branch
                  %1052 = sbr.rel target = $region107
                $region112: #{temporal_block_forward.4} parent=104 // loop_exit
                  _
              $region105: #{temporal_block_forward.4} parent=89 // pred_fallthru
                _
              // Predicated region
              $region113: #{temporal_block_forward.4} parent=89 // pred_check
                _
              $region114: #{temporal_block_forward.4} parent=89 // pred_check_branch
                %1081 = sbr.rel target = $region116
              $region115: #{temporal_block_forward.4} parent=89 // pred_region
                _
              $region116: #{temporal_block_forward.4} parent=89 // pred_fallthru
                _
            $region90: #{temporal_block_forward.4} parent=85 // pred_fallthru
              _
            // Predicated region
            $region91: #{temporal_block_forward.4} parent=85 // pred_check
              _
            $region92: #{temporal_block_forward.4} parent=85 // pred_check_branch
              %1019 = sbr.rel target = $region94
            $region93: #{temporal_block_forward.4} parent=85 // pred_region
              %s1021 = ssub.s32 256, 1
              loop: start=0, step=1, limit=1
              $region95: #{temporal_block_forward.4} parent=93 // loop_pre_header
                _
              $region96: #{temporal_block_forward.4} parent=93 // loop_header
                %s1023 = sphi 0, %s1027
                %p1024 = scmp.ge.s32.totalorder %s1023, 1
                %s1028 = sphi %s997, %s997
                %s1029 = sphi %s1013, %s1013
              $region97: #{temporal_block_forward.4} parent=93 // loop_header_branch
                %1026 = sbr.rel (%p1024) target = $region101
              $region98: #{temporal_block_forward.4} parent=93 // loop_body
                %v1030 = vld [vmem:[%s1028] sm:%s1021]
                %1031 = vst [vmem:[%s1029] sm:%s1021] %v1030
                %v1032 = vld [vmem:[%s1028 + $0x8] sm:%s1021]
                %1033 = vst [vmem:[%s1029 + $0x10] sm:%s1021] %v1032
                %v1034 = vld [vmem:[%s1028 + $0x10] sm:%s1021]
                %1035 = vst [vmem:[%s1029 + $0x20] sm:%s1021] %v1034
                %v1036 = vld [vmem:[%s1028 + $0x18] sm:%s1021]
                %1037 = vst [vmem:[%s1029 + $0x30] sm:%s1021] %v1036
                %v1038 = vld [vmem:[%s1028 + $0x20] sm:%s1021]
                %1039 = vst [vmem:[%s1029 + $0x40] sm:%s1021] %v1038
                %v1040 = vld [vmem:[%s1028 + $0x28] sm:%s1021]
                %1041 = vst [vmem:[%s1029 + $0x50] sm:%s1021] %v1040
                %v1042 = vld [vmem:[%s1028 + $0x30] sm:%s1021]
                %1043 = vst [vmem:[%s1029 + $0x60] sm:%s1021] %v1042
                %v1044 = vld [vmem:[%s1028 + $0x38] sm:%s1021]
                %1045 = vst [vmem:[%s1029 + $0x70] sm:%s1021] %v1044
                %v1046 = vld [vmem:[%s1028 + $0x40] sm:%s1021]
                %1047 = vst [vmem:[%s1029 + $0x80] sm:%s1021] %v1046
                %v1048 = vld [vmem:[%s1028 + $0x48] sm:%s1021]
                %1049 = vst [vmem:[%s1029 + $0x90] sm:%s1021] %v1048
              $region99: #{temporal_block_forward.4} parent=93 // loop_footer
                %s1027 = sadd.s32 1, %s1023
              $region100: #{temporal_block_forward.4} parent=93 // loop_footer_branch
                %1022 = sbr.rel target = $region96
              $region101: #{temporal_block_forward.4} parent=93 // loop_exit
                _
            $region94: #{temporal_block_forward.4} parent=85 // pred_fallthru
              _
          $region86: #{temporal_block_forward.4} parent=81 // pred_fallthru
            _
          %1082 = vnop
        $region82: #{temporal_block_forward.4} parent=73 // pred_fallthru
          _
        // Predicated region
        $region117: #{temporal_block_forward.4} parent=73 // pred_check
          %p1083 = pneg %p173
        $region118: #{temporal_block_forward.4} parent=73 // pred_check_branch
          %1085 = sbr.rel (%p1083) target = $region120
        $region119: #{temporal_block_forward.4} parent=73 // pred_region
          _
        $region120: #{temporal_block_forward.4} parent=73 // pred_fallthru
          _
        // Predicated region
        $region121: #{temporal_block_forward.4} parent=73 // pred_check
          %p1086 = pneg %p199
        $region122: #{temporal_block_forward.4} parent=73 // pred_check_branch
          %1088 = sbr.rel (%p1086) target = $region124
        $region123: #{temporal_block_forward.4} parent=73 // pred_region
          _
        $region124: #{temporal_block_forward.4} parent=73 // pred_fallthru
          _
      $region74: #{temporal_block_forward.4} parent=5 // pred_fallthru
        _
      %p1089 = scmp.le.s32.totalorder 2, %s14
      // Predicated region
      $region125: #{temporal_block_forward.4} parent=5 // pred_check
        %p1090 = pneg %p1089
      $region126: #{temporal_block_forward.4} parent=5 // pred_check_branch
        %1092 = sbr.rel (%p1090) target = $region128
      $region127: #{temporal_block_forward.4} parent=5 // pred_region
        %s1093 = ssub.s32 %s14, 2
        // Predicated region
        $region129: #{temporal_block_forward.4} parent=127 // pred_check
          %p1094 = pneg %p153
        $region130: #{temporal_block_forward.4} parent=127 // pred_check_branch
          %1096 = sbr.rel (%p1094) target = $region132
        $region131: #{temporal_block_forward.4} parent=127 // pred_region
          %s1097 = sand.u32 %s138, 1
          %s1098 = sand.u32 %s138, 1
          %s1099 = smul.addr %s1098, 80
          %s1100 = scalar_lea.vmem [#allocation3], %s1099
        $region132: #{temporal_block_forward.4} parent=127 // pred_fallthru
          _
        // Predicated region
        $region133: #{temporal_block_forward.4} parent=127 // pred_check
          %p1101 = pneg %p179
        $region134: #{temporal_block_forward.4} parent=127 // pred_check_branch
          %1103 = sbr.rel (%p1101) target = $region136
        $region135: #{temporal_block_forward.4} parent=127 // pred_region
          %p1104 = scmp.lt.s32.totalorder %s20, 1
          %s1105 = scalar_select %p1104, %s20, 1
          %s1106 = smul.addr %s1105, 8
          %s1107 = smul.addr %s1106, 8
          %s1108 = scalar_lea.vmem %s6, %s1107
        $region136: #{temporal_block_forward.4} parent=127 // pred_fallthru
          _
        // Predicated region
        $region137: #{temporal_block_forward.4} parent=127 // pred_check
          %p1109 = pneg %p205
        $region138: #{temporal_block_forward.4} parent=127 // pred_check_branch
          %1111 = sbr.rel (%p1109) target = $region140
        $region139: #{temporal_block_forward.4} parent=127 // pred_region
          %p1112 = scmp.lt.s32.totalorder %s20, 1
          %s1113 = scalar_select %p1112, %s20, 1
          %s1114 = smul.addr %s1113, 8
          %s1115 = smul.addr %s1114, 8
          %s1116 = scalar_lea.vmem %s7, %s1115
        $region140: #{temporal_block_forward.4} parent=127 // pred_fallthru
          _
      $region128: #{temporal_block_forward.4} parent=5 // pred_fallthru
        _
    $region6: #{temporal_block_forward.4} parent=1 // loop_footer
      %s18 = sadd.s32 1, %s14
    $region7: #{temporal_block_forward.4} parent=1 // loop_footer_branch
      %13 = sbr.rel target = $region3
    $region8: #{temporal_block_forward.4} parent=1 // loop_exit
      _

// kernel: temporal_block_forward.5
$region0: #{temporal_block_forward.5}
  #allocation0 [shape = 'u32[]', space=smem, size = 0x4, offset = 0x4, fixed_abs, tag = 'smem constant byte address 0x4 - core index']
  #allocation1 [shape = 'u32[72,128]{1,0:T(1,128)}', space=vmem, size = 0x9000, scoped, tag = 'internal scratch']
  %s0 = inlined_call_operand.vmem [shape: bf16[80,512], index: 0, kind: input, shape index: {}]
  %s1 = inlined_call_operand.vmem [shape: bf16[64,80], index: 1, kind: input, shape index: {}]
  %s2 = inlined_call_operand.vmem [shape: f32[64,1], index: 2, kind: input, shape index: {}]
  %s3 = inlined_call_operand.vmem [shape: f32[64,1], index: 3, kind: input, shape index: {}]
  %s4 = inlined_call_operand.vmem [shape: bf16[80,512], index: 4, kind: output, shape index: {}]
  %s5 = sld [smem:[#allocation0]]
  $region121: #{temporal_block_forward.5} parent=0
    _
  %s7 = ssub.s32 1, %s5
  %s8 = scalar_select 0, %s7, %s5
  $region1: #{temporal_block_forward.5} parent=0
    #allocation2 [shape = 'u8[81920]{0}', space=vmem, size = 0x14000, scoped, tag = 'input window, operand 0']
    #allocation3 [shape = 'u8[81920]{0}', space=vmem, size = 0x14000, scoped, tag = 'output window, operand 0']
    loop: start=0, step=1, limit=4
    $region2: #{temporal_block_forward.5} parent=1 // loop_pre_header
      _
    $region3: #{temporal_block_forward.5} parent=1 // loop_header
      %s10 = sphi 0, %s14
      %p11 = scmp.ge.s32.totalorder %s10, 4
      %s20 = sphi 0, %s22
      %s23 = sphi 0, %s20
      %s24 = sphi 0, %s23
      %s40 = sphi 0, %s24
      %s44 = sphi 0, %s44
      %s46 = sphi 0, %s44
      %s47 = sphi 0, %s46
      %s61 = sphi 0, %s47
      %s65 = sphi 0, %s65
      %s67 = sphi 0, %s65
      %s68 = sphi 0, %s67
      %s82 = sphi 0, %s68
      %s86 = sphi 0, %s86
      %s88 = sphi 0, %s86
      %s89 = sphi 0, %s88
      %s103 = sphi 0, %s89
      %s109 = sphi 0, %s111
      %s112 = sphi 0, %s109
      %s113 = sphi 0, %s112
      %s129 = sphi 0, %s113
    $region4: #{temporal_block_forward.5} parent=1 // loop_header_branch
      %13 = sbr.rel (%p11) target = $region8
    $region5: #{temporal_block_forward.5} parent=1 // loop_body
      %s15 = ssub.s32 %s10, 1
      %s16 = ssub.s32 %s10, 2
      %s17 = sadd.s32 %s10, 1
      %s18 = ssub.s32 %s10, %s17
      %p19 = scmp.eq.s32.totalorder %s18, 0
      %s21 = sadd.s32 %s20, 1
      %s22 = scalar_select %p19, %s20, %s21
      %p25 = pneg %p19
      %p26 = scmp.eq.s32.totalorder %s10, 1
      %p27 = por %p25, %p26
      %p28 = scmp.ne.s32.totalorder %s20, %s23
      %p29 = scmp.eq.s32.totalorder %s10, 0
      %p30 = por %p28, %p29
      %p31 = scmp.ne.s32.totalorder %s20, %s23
      %p32 = scmp.eq.s32.totalorder %s15, 1
      %p33 = por %p31, %p32
      %p34 = scmp.ne.s32.totalorder %s23, %s24
      %p35 = scmp.eq.s32.totalorder %s15, 0
      %p36 = por %p34, %p35
      %p37 = scmp.ne.s32.totalorder %s23, %s24
      %p38 = scmp.eq.s32.totalorder %s16, 1
      %p39 = por %p37, %p38
      %p41 = scmp.ne.s32.totalorder %s24, %s40
      %p42 = scmp.eq.s32.totalorder %s16, 0
      %p43 = por %p41, %p42
      %s45 = sadd.s32 %s44, 1
      %p48 = scmp.eq.s32.totalorder %s10, 1
      %p49 = scmp.ne.s32.totalorder %s44, %s46
      %p50 = scmp.eq.s32.totalorder %s10, 0
      %p51 = por %p49, %p50
      %p52 = scmp.ne.s32.totalorder %s44, %s46
      %p53 = scmp.eq.s32.totalorder %s15, 1
      %p54 = por %p52, %p53
      %p55 = scmp.ne.s32.totalorder %s46, %s47
      %p56 = scmp.eq.s32.totalorder %s15, 0
      %p57 = por %p55, %p56
      %p58 = scmp.ne.s32.totalorder %s46, %s47
      %p59 = scmp.eq.s32.totalorder %s16, 1
      %p60 = por %p58, %p59
      %p62 = scmp.ne.s32.totalorder %s47, %s61
      %p63 = scmp.eq.s32.totalorder %s16, 0
      %p64 = por %p62, %p63
      %s66 = sadd.s32 %s65, 1
      %p69 = scmp.eq.s32.totalorder %s10, 1
      %p70 = scmp.ne.s32.totalorder %s65, %s67
      %p71 = scmp.eq.s32.totalorder %s10, 0
      %p72 = por %p70, %p71
      %p73 = scmp.ne.s32.totalorder %s65, %s67
      %p74 = scmp.eq.s32.totalorder %s15, 1
      %p75 = por %p73, %p74
      %p76 = scmp.ne.s32.totalorder %s67, %s68
      %p77 = scmp.eq.s32.totalorder %s15, 0
      %p78 = por %p76, %p77
      %p79 = scmp.ne.s32.totalorder %s67, %s68
      %p80 = scmp.eq.s32.totalorder %s16, 1
      %p81 = por %p79, %p80
      %p83 = scmp.ne.s32.totalorder %s68, %s82
      %p84 = scmp.eq.s32.totalorder %s16, 0
      %p85 = por %p83, %p84
      %s87 = sadd.s32 %s86, 1
      %p90 = scmp.eq.s32.totalorder %s10, 1
      %p91 = scmp.ne.s32.totalorder %s86, %s88
      %p92 = scmp.eq.s32.totalorder %s10, 0
      %p93 = por %p91, %p92
      %p94 = scmp.ne.s32.totalorder %s86, %s88
      %p95 = scmp.eq.s32.totalorder %s15, 1
      %p96 = por %p94, %p95
      %p97 = scmp.ne.s32.totalorder %s88, %s89
      %p98 = scmp.eq.s32.totalorder %s15, 0
      %p99 = por %p97, %p98
      %p100 = scmp.ne.s32.totalorder %s88, %s89
      %p101 = scmp.eq.s32.totalorder %s16, 1
      %p102 = por %p100, %p101
      %p104 = scmp.ne.s32.totalorder %s89, %s103
      %p105 = scmp.eq.s32.totalorder %s16, 0
      %p106 = por %p104, %p105
      %s107 = ssub.s32 %s10, %s17
      %p108 = scmp.eq.s32.totalorder %s107, 0
      %s110 = sadd.s32 %s109, 1
      %s111 = scalar_select %p108, %s109, %s110
      %p114 = pneg %p108
      %p115 = scmp.eq.s32.totalorder %s10, 1
      %p116 = por %p114, %p115
      %p117 = scmp.ne.s32.totalorder %s109, %s112
      %p118 = scmp.eq.s32.totalorder %s10, 0
      %p119 = por %p117, %p118
      %p120 = scmp.ne.s32.totalorder %s109, %s112
      %p121 = scmp.eq.s32.totalorder %s15, 1
      %p122 = por %p120, %p121
      %p123 = scmp.ne.s32.totalorder %s112, %s113
      %p124 = scmp.eq.s32.totalorder %s15, 0
      %p125 = por %p123, %p124
      %p126 = scmp.ne.s32.totalorder %s112, %s113
      %p127 = scmp.eq.s32.totalorder %s16, 1
      %p128 = por %p126, %p127
      %p130 = scmp.ne.s32.totalorder %s113, %s129
      %p131 = scmp.eq.s32.totalorder %s16, 0
      %p132 = por %p130, %p131
      %p133 = scmp.le.s32.totalorder 1, %s10
      %p134 = scmp.lt.s32.totalorder %s10, 3
      %p135 = pnand %p133, %p134
      %p136 = pneg %p135
      // Predicated region
      $region9: #{temporal_block_forward.5} parent=5 // pred_check
        _
      $region10: #{temporal_block_forward.5} parent=5 // pred_check_branch
        %138 = sbr.rel (%p135) target = $region12
      $region11: #{temporal_block_forward.5} parent=5 // pred_region
        %s139 = ssub.s32 %s10, 1
        // Predicated region
        $region13: #{temporal_block_forward.5} parent=11 // pred_check
          %p140 = pneg %p57
        $region14: #{temporal_block_forward.5} parent=11 // pred_check_branch
          %142 = sbr.rel (%p140) target = $region16
        $region15: #{temporal_block_forward.5} parent=11 // pred_region
          _
        $region16: #{temporal_block_forward.5} parent=11 // pred_fallthru
          _
        // Predicated region
        $region17: #{temporal_block_forward.5} parent=11 // pred_check
          %p143 = pneg %p78
        $region18: #{temporal_block_forward.5} parent=11 // pred_check_branch
          %145 = sbr.rel (%p143) target = $region20
        $region19: #{temporal_block_forward.5} parent=11 // pred_region
          _
        $region20: #{temporal_block_forward.5} parent=11 // pred_fallthru
          _
        // Predicated region
        $region21: #{temporal_block_forward.5} parent=11 // pred_check
          %p146 = pneg %p99
        $region22: #{temporal_block_forward.5} parent=11 // pred_check_branch
          %148 = sbr.rel (%p146) target = $region24
        $region23: #{temporal_block_forward.5} parent=11 // pred_region
          _
        $region24: #{temporal_block_forward.5} parent=11 // pred_fallthru
          _
      $region12: #{temporal_block_forward.5} parent=5 // pred_fallthru
        _
      %p149 = scmp.lt.s32.totalorder %s10, 2
      // Predicated region
      $region25: #{temporal_block_forward.5} parent=5 // pred_check
        %p150 = pneg %p149
      $region26: #{temporal_block_forward.5} parent=5 // pred_check_branch
        %152 = sbr.rel (%p150) target = $region28
      $region27: #{temporal_block_forward.5} parent=5 // pred_region
        // Predicated region
        $region29: #{temporal_block_forward.5} parent=27 // pred_check
          %p153 = pneg %p30
        $region30: #{temporal_block_forward.5} parent=27 // pred_check_branch
          %155 = sbr.rel (%p153) target = $region32
        $region31: #{temporal_block_forward.5} parent=27 // pred_region
          %s156 = sand.u32 %s20, 1
          %s157 = sand.u32 %s20, 1
          %s158 = smul.addr %s157, 80
          %s159 = scalar_lea.vmem [#allocation2], %s158
          %s160 = smul.u32 2, %s10
          %s161 = smul.addr %s160, 4
          %s162 = scalar_lea.vmem %s0, %s161
          // Predicated region
          $region33: #{temporal_block_forward.5} parent=31 // pred_check
            _
          $region34: #{temporal_block_forward.5} parent=31 // pred_check_branch
            %164 = sbr.rel (0) target = $region36
          $region35: #{temporal_block_forward.5} parent=31 // pred_region
            // Predicated region
            $region37: #{temporal_block_forward.5} parent=35 // pred_check
              _
            $region38: #{temporal_block_forward.5} parent=35 // pred_check_branch
              %166 = sbr.rel (0) target = $region40
            $region39: #{temporal_block_forward.5} parent=35 // pred_region
              // Predicated region
              $region52: #{temporal_block_forward.5} parent=39 // pred_check
                _
              $region53: #{temporal_block_forward.5} parent=39 // pred_check_branch
                %200 = sbr.rel (0) target = $region55
              $region54: #{temporal_block_forward.5} parent=39 // pred_region
                loop: start=0, step=1, limit=1
                $region56: #{temporal_block_forward.5} parent=54 // loop_pre_header
                  _
                $region57: #{temporal_block_forward.5} parent=54 // loop_header
                  %s202 = sphi 0, %s206
                  %p203 = scmp.ge.s32.totalorder %s202, 1
                  %s207 = sphi %s162, %s162
                  %s208 = sphi %s159, %s159
                $region58: #{temporal_block_forward.5} parent=54 // loop_header_branch
                  %205 = sbr.rel (%p203) target = $region62
                $region59: #{temporal_block_forward.5} parent=54 // loop_body
                  %v209 = vld [vmem:[%s207] sm:$0xff]
                  %210 = vst [vmem:[%s208] sm:$0xff] %v209
                  %v211 = vld [vmem:[%s207 + $0x10] sm:$0xff]
                  %212 = vst [vmem:[%s208 + $0x8] sm:$0xff] %v211
                  %v213 = vld [vmem:[%s207 + $0x20] sm:$0xff]
                  %214 = vst [vmem:[%s208 + $0x10] sm:$0xff] %v213
                  %v215 = vld [vmem:[%s207 + $0x30] sm:$0xff]
                  %216 = vst [vmem:[%s208 + $0x18] sm:$0xff] %v215
                  %v217 = vld [vmem:[%s207 + $0x40] sm:$0xff]
                  %218 = vst [vmem:[%s208 + $0x20] sm:$0xff] %v217
                  %v219 = vld [vmem:[%s207 + $0x50] sm:$0xff]
                  %220 = vst [vmem:[%s208 + $0x28] sm:$0xff] %v219
                  %v221 = vld [vmem:[%s207 + $0x60] sm:$0xff]
                  %222 = vst [vmem:[%s208 + $0x30] sm:$0xff] %v221
                  %v223 = vld [vmem:[%s207 + $0x70] sm:$0xff]
                  %224 = vst [vmem:[%s208 + $0x38] sm:$0xff] %v223
                  %v225 = vld [vmem:[%s207 + $0x80] sm:$0xff]
                  %226 = vst [vmem:[%s208 + $0x40] sm:$0xff] %v225
                  %v227 = vld [vmem:[%s207 + $0x90] sm:$0xff]
                  %228 = vst [vmem:[%s208 + $0x48] sm:$0xff] %v227
                $region60: #{temporal_block_forward.5} parent=54 // loop_footer
                  %s206 = sadd.s32 1, %s202
                $region61: #{temporal_block_forward.5} parent=54 // loop_footer_branch
                  %201 = sbr.rel target = $region57
                $region62: #{temporal_block_forward.5} parent=54 // loop_exit
                  _
              $region55: #{temporal_block_forward.5} parent=39 // pred_fallthru
                _
              // Predicated region
              $region63: #{temporal_block_forward.5} parent=39 // pred_check
                _
              $region64: #{temporal_block_forward.5} parent=39 // pred_check_branch
                %230 = sbr.rel target = $region66
              $region65: #{temporal_block_forward.5} parent=39 // pred_region
                _
              $region66: #{temporal_block_forward.5} parent=39 // pred_fallthru
                _
            $region40: #{temporal_block_forward.5} parent=35 // pred_fallthru
              _
            // Predicated region
            $region41: #{temporal_block_forward.5} parent=35 // pred_check
              _
            $region42: #{temporal_block_forward.5} parent=35 // pred_check_branch
              %168 = sbr.rel target = $region44
            $region43: #{temporal_block_forward.5} parent=35 // pred_region
              %s170 = ssub.s32 256, 1
              loop: start=0, step=1, limit=1
              $region45: #{temporal_block_forward.5} parent=43 // loop_pre_header
                _
              $region46: #{temporal_block_forward.5} parent=43 // loop_header
                %s172 = sphi 0, %s176
                %p173 = scmp.ge.s32.totalorder %s172, 1
                %s177 = sphi %s162, %s162
                %s178 = sphi %s159, %s159
              $region47: #{temporal_block_forward.5} parent=43 // loop_header_branch
                %175 = sbr.rel (%p173) target = $region51
              $region48: #{temporal_block_forward.5} parent=43 // loop_body
                %v179 = vld [vmem:[%s177] sm:%s170]
                %180 = vst [vmem:[%s178] sm:%s170] %v179
                %v181 = vld [vmem:[%s177 + $0x10] sm:%s170]
                %182 = vst [vmem:[%s178 + $0x8] sm:%s170] %v181
                %v183 = vld [vmem:[%s177 + $0x20] sm:%s170]
                %184 = vst [vmem:[%s178 + $0x10] sm:%s170] %v183
                %v185 = vld [vmem:[%s177 + $0x30] sm:%s170]
                %186 = vst [vmem:[%s178 + $0x18] sm:%s170] %v185
                %v187 = vld [vmem:[%s177 + $0x40] sm:%s170]
                %188 = vst [vmem:[%s178 + $0x20] sm:%s170] %v187
                %v189 = vld [vmem:[%s177 + $0x50] sm:%s170]
                %190 = vst [vmem:[%s178 + $0x28] sm:%s170] %v189
                %v191 = vld [vmem:[%s177 + $0x60] sm:%s170]
                %192 = vst [vmem:[%s178 + $0x30] sm:%s170] %v191
                %v193 = vld [vmem:[%s177 + $0x70] sm:%s170]
                %194 = vst [vmem:[%s178 + $0x38] sm:%s170] %v193
                %v195 = vld [vmem:[%s177 + $0x80] sm:%s170]
                %196 = vst [vmem:[%s178 + $0x40] sm:%s170] %v195
                %v197 = vld [vmem:[%s177 + $0x90] sm:%s170]
                %198 = vst [vmem:[%s178 + $0x48] sm:%s170] %v197
              $region49: #{temporal_block_forward.5} parent=43 // loop_footer
                %s176 = sadd.s32 1, %s172
              $region50: #{temporal_block_forward.5} parent=43 // loop_footer_branch
                %171 = sbr.rel target = $region46
              $region51: #{temporal_block_forward.5} parent=43 // loop_exit
                _
            $region44: #{temporal_block_forward.5} parent=35 // pred_fallthru
              _
          $region36: #{temporal_block_forward.5} parent=31 // pred_fallthru
            _
          %231 = vnop
        $region32: #{temporal_block_forward.5} parent=27 // pred_fallthru
          _
      $region28: #{temporal_block_forward.5} parent=5 // pred_fallthru
        _
      %p232 = scmp.le.s32.totalorder 1, %s10
      %p233 = scmp.lt.s32.totalorder %s10, 3
      %p234 = pnand %p232, %p233
      %p235 = pneg %p234
      // Predicated region
      $region67: #{temporal_block_forward.5} parent=5 // pred_check
        _
      $region68: #{temporal_block_forward.5} parent=5 // pred_check_branch
        %237 = sbr.rel (%p234) target = $region70
      $region69: #{temporal_block_forward.5} parent=5 // pred_region
        %s238 = ssub.s32 %s10, 1
        %s239 = sand.u32 %s23, 1
        %s240 = sand.u32 %s23, 1
        %s241 = smul.addr %s240, 80
        %s242 = scalar_lea.vmem [#allocation2], %s241
        // Predicated region
        $region71: #{temporal_block_forward.5} parent=69 // pred_check
          %p243 = pneg %p36
        $region72: #{temporal_block_forward.5} parent=69 // pred_check_branch
          %245 = sbr.rel (%p243) target = $region74
        $region73: #{temporal_block_forward.5} parent=69 // pred_region
          _
        $region74: #{temporal_block_forward.5} parent=69 // pred_fallthru
          _
        %s246 = sand.u32 %s23, 1
        %s247 = sand.u32 %s23, 1
        %s248 = smul.addr %s247, 80
        %s249 = scalar_lea.vmem [#allocation2], %s248
        %p250 = pneg %p36
        %p251 = pneg %p33
        %p252 = pneg %p57
        %p253 = pneg %p54
        %p254 = pneg %p78
        %p255 = pneg %p75
        %p256 = pneg %p99
        %p257 = pneg %p96
        %p258 = pneg %p125
        %p259 = pneg %p122
        %s260 = sand.u32 %s112, 1
        %s261 = sand.u32 %s112, 1
        %s262 = smul.addr %s261, 80
        %s263 = scalar_lea.vmem [#allocation3], %s262
        %s264 = smul.u32 2, %s15
        %s265 = smul.u32 2, %s15
        %v267 = vld [vmem:[%s1] sm:$0xf]
        %v268 = vld [vmem:[%s1 + $0x4] sm:$0xf]
        %v269 = vld [vmem:[%s1 + $0x8] sm:$0xf]
        %v270 = vld [vmem:[%s1 + $0xc] sm:$0xf]
        %v271 = vld [vmem:[%s1 + $0x10] sm:$0xf]
        %v272 = vld [vmem:[%s1 + $0x14] sm:$0xf]
        %v273 = vld [vmem:[%s1 + $0x18] sm:$0xf]
        %v274 = vld [vmem:[%s1 + $0x1c] sm:$0xf]
        %v275 = vld [vmem:[%s2] sm:$0xff]
        %v276 = vld [vmem:[%s2 + $0x8] sm:$0xff]
        %v277 = vld [vmem:[%s2 + $0x10] sm:$0xff]
        %v278 = vld [vmem:[%s2 + $0x18] sm:$0xff]
        %v279 = vld [vmem:[%s2 + $0x20] sm:$0xff]
        %v280 = vld [vmem:[%s2 + $0x28] sm:$0xff]
        %v281 = vld [vmem:[%s2 + $0x30] sm:$0xff]
        %v282 = vld [vmem:[%s2 + $0x38] sm:$0xff]
        %v283 = vld [vmem:[%s3] sm:$0xff]
        %v284 = vld [vmem:[%s3 + $0x8] sm:$0xff]
        %v285 = vld [vmem:[%s3 + $0x10] sm:$0xff]
        %v286 = vld [vmem:[%s3 + $0x18] sm:$0xff]
        %v287 = vld [vmem:[%s3 + $0x20] sm:$0xff]
        %v288 = vld [vmem:[%s3 + $0x28] sm:$0xff]
        %v289 = vld [vmem:[%s3 + $0x30] sm:$0xff]
        %v290 = vld [vmem:[%s3 + $0x38] sm:$0xff]
        %s291 = smul.u32 %s15, 256
        %v292 = vlaneseq
        %v293 = vand.u32 %v292, 127
        %v294 = vadd.s32 %v293, 128
        %v295 = vstv %s291
        %v296 = vadd.s32 %v295, %v293
        %v297 = vadd.s32 %v295, %v294
        %vm298 = vcmp.lt.s32.totalorder %v296, 480
        %vm299 = vcmp.lt.s32.totalorder %v297, 480
        %300 = vst [vmem:[%s263] sm:$0xff] 0
        %301 = vst [vmem:[%s263 + $0x48] sm:$0xff] 0
        %v302 = vld [vmem:[%s242] sm:$0xff]
        %v303 = vld [vmem:[%s242 + $0x8] sm:$0xff]
        %v304 = vld [vmem:[%s242 + $0x10] sm:$0xff]
        %v305 = vld [vmem:[%s242 + $0x18] sm:$0xff]
        %v306 = vld [vmem:[%s242 + $0x20] sm:$0xff]
        %v307 = vld [vmem:[%s242 + $0x28] sm:$0xff]
        %v308 = vld [vmem:[%s242 + $0x30] sm:$0xff]
        %v309 = vld [vmem:[%s242 + $0x38] sm:$0xff]
        %v310 = vld [vmem:[%s242 + $0x40] sm:$0xff]
        %v311 = vld [vmem:[%s242 + $0x48] sm:$0xff]
        %v320 = vunpack.c.l.b16 %v267
        %v321 = vunpack.c.l.b16 %v268
        %v322 = vunpack.c.l.b16 %v269
        %v323 = vunpack.c.l.b16 %v270
        %v324 = vunpack.c.l.b16 %v271
        %v325 = vunpack.c.l.b16 %v272
        %v326 = vunpack.c.l.b16 %v273
        %v327 = vunpack.c.l.b16 %v274
        %v328 = vpack.c.b16 %v321, %v320
        %v329 = vpack.c.b16 %v323, %v322
        %v330 = vpack.c.b16 %v325, %v324
        %v331 = vpack.c.b16 %v327, %v326
        %v342 = vunpack.c.l.b16 %v302
        %v343 = vunpack.c.h.b16 %v302
        %v344 = vunpack.c.l.b16 %v303
        %v345 = vunpack.c.h.b16 %v303
        %v346 = vunpack.c.l.b16 %v304
        %v347 = vunpack.c.h.b16 %v304
        %v348 = vunpack.c.l.b16 %v305
        %v349 = vunpack.c.h.b16 %v305
        %v350 = vunpack.c.l.b16 %v306
        %v351 = vunpack.c.h.b16 %v306
        %v352 = vunpack.c.l.b16 %v307
        %v353 = vunpack.c.h.b16 %v307
        %v354 = vunpack.c.l.b16 %v308
        %v355 = vunpack.c.h.b16 %v308
        %v356 = vunpack.c.l.b16 %v309
        %v357 = vunpack.c.h.b16 %v309
        %v358 = vunpack.c.l.b16 %v310
        %v359 = vunpack.c.h.b16 %v310
        %v360 = vunpack.c.l.b16 %v311
        %v361 = vunpack.c.h.b16 %v311
        %v362 = vpack.c.b16 %v344, %v342
        %v363 = vpack.c.b16 %v345, %v343
        %v364 = vpack.c.b16 %v348, %v346
        %v365 = vpack.c.b16 %v349, %v347
        %v366 = vpack.c.b16 %v352, %v350
        %v367 = vpack.c.b16 %v353, %v351
        %v368 = vpack.c.b16 %v356, %v354
        %v369 = vpack.c.b16 %v357, %v355
        %v370 = vpack.c.b16 %v360, %v358
        %v371 = vpack.c.b16 %v361, %v359
        %vm382 = vcmask 654336
        %v384 = vsel %vm382, %v328, 0
        %v387 = vsel %vm382, %v329, 0
        %v390 = vsel %vm382, %v330, 0
        %v393 = vsel %vm382, %v331, 0
        %395 = vmatpush.bf16.msra.mxu0 0
        %396 = vmatpush.bf16.msra.mxu0 0
        %397 = vmatpush.bf16.msra.mxu0 0
        %398 = vmatpush.bf16.msra.mxu0 %v370
        %399 = vmatpush.bf16.msra.mxu0 %v368
        %400 = vmatpush.bf16.msra.mxu0 %v366
        %401 = vmatpush.bf16.msra.mxu0 %v364
        %402 = vmatpush.bf16.msra.mxu0 %v362
        %403 = vmatmul.bf16.gmra.mxu0 %v384
        %v404 = vpop.f32.mrf.mxu0
        %v405 = vadd.f32 0.0, %v404
        %v406 = vpop.f32.mrf.mxu0
        %v407 = vadd.f32 0.0, %v406
        %408 = vmatmul.bf16.gmra.mxu0 %v387
        %v409 = vpop.f32.mrf.mxu0
        %v410 = vadd.f32 0.0, %v409
        %v411 = vpop.f32.mrf.mxu0
        %v412 = vadd.f32 0.0, %v411
        %413 = vmatmul.bf16.gmra.mxu0 %v390
        %v414 = vpop.f32.mrf.mxu0
        %v415 = vadd.f32 0.0, %v414
        %v416 = vpop.f32.mrf.mxu0
        %v417 = vadd.f32 0.0, %v416
        %418 = vmatmul.bf16.gmra.mxu0 %v393
        %v419 = vpop.f32.mrf.mxu0
        %v420 = vadd.f32 0.0, %v419
        %v421 = vpop.f32.mrf.mxu0
        %v422 = vadd.f32 0.0, %v421
        %423 = vdwg.mxu0
        %424 = vmatpush.bf16.msra.mxu0 0
        %425 = vmatpush.bf16.msra.mxu0 0
        %426 = vmatpush.bf16.msra.mxu0 0
        %427 = vmatpush.bf16.msra.mxu0 %v371
        %428 = vmatpush.bf16.msra.mxu0 %v369
        %429 = vmatpush.bf16.msra.mxu0 %v367
        %430 = vmatpush.bf16.msra.mxu0 %v365
        %431 = vmatpush.bf16.msra.mxu0 %v363
        %432 = vmatmul.bf16.gmra.mxu0 %v384
        %v433 = vpop.f32.mrf.mxu0
        %v434 = vadd.f32 0.0, %v433
        %v435 = vpop.f32.mrf.mxu0
        %v436 = vadd.f32 0.0, %v435
        %437 = vmatmul.bf16.gmra.mxu0 %v387
        %v438 = vpop.f32.mrf.mxu0
        %v439 = vadd.f32 0.0, %v438
        %v440 = vpop.f32.mrf.mxu0
        %v441 = vadd.f32 0.0, %v440
        %442 = vmatmul.bf16.gmra.mxu0 %v390
        %v443 = vpop.f32.mrf.mxu0
        %v444 = vadd.f32 0.0, %v443
        %v445 = vpop.f32.mrf.mxu0
        %v446 = vadd.f32 0.0, %v445
        %447 = vmatmul.bf16.gmra.mxu0 %v393
        %v448 = vpop.f32.mrf.mxu0
        %v449 = vadd.f32 0.0, %v448
        %v450 = vpop.f32.mrf.mxu0
        %v451 = vadd.f32 0.0, %v450
        %452 = vdwg.mxu0
        %454 = vset.pattern.permute.xlu0 0
        %455 = vperm.xlu0 %454, %v275
        %v456 = vpop.permute.xlu0 %455
        %459 = vset.pattern.permute.xlu0 0
        %460 = vperm.xlu0 %459, %v276
        %v461 = vpop.permute.xlu0 %460
        %464 = vset.pattern.permute.xlu0 0
        %465 = vperm.xlu0 %464, %v277
        %v466 = vpop.permute.xlu0 %465
        %469 = vset.pattern.permute.xlu0 0
        %470 = vperm.xlu0 %469, %v278
        %v471 = vpop.permute.xlu0 %470
        %474 = vset.pattern.permute.xlu0 0
        %475 = vperm.xlu0 %474, %v279
        %v476 = vpop.permute.xlu0 %475
        %479 = vset.pattern.permute.xlu0 0
        %480 = vperm.xlu0 %479, %v280
        %v481 = vpop.permute.xlu0 %480
        %484 = vset.pattern.permute.xlu0 0
        %485 = vperm.xlu0 %484, %v281
        %v486 = vpop.permute.xlu0 %485
        %489 = vset.pattern.permute.xlu0 0
        %490 = vperm.xlu0 %489, %v282
        %v491 = vpop.permute.xlu0 %490
        %v493 = vmul.f32 %v405, %v456
        %v494 = vmul.f32 %v434, %v456
        %v495 = vmul.f32 %v407, %v461
        %v496 = vmul.f32 %v436, %v461
        %v497 = vmul.f32 %v410, %v466
        %v498 = vmul.f32 %v439, %v466
        %v499 = vmul.f32 %v412, %v471
        %v500 = vmul.f32 %v441, %v471
        %v501 = vmul.f32 %v415, %v476
        %v502 = vmul.f32 %v444, %v476
        %v503 = vmul.f32 %v417, %v481
        %v504 = vmul.f32 %v446, %v481
        %v505 = vmul.f32 %v420, %v486
        %v506 = vmul.f32 %v449, %v486
        %v507 = vmul.f32 %v422, %v491
        %v508 = vmul.f32 %v451, %v491
        %510 = vset.pattern.permute.xlu0 0
        %511 = vperm.xlu0 %510, %v283
        %v512 = vpop.permute.xlu0 %511
        %515 = vset.pattern.permute.xlu0 0
        %516 = vperm.xlu0 %515, %v284
        %v517 = vpop.permute.xlu0 %516
        %520 = vset.pattern.permute.xlu0 0
        %521 = vperm.xlu0 %520, %v285
        %v522 = vpop.permute.xlu0 %521
        %525 = vset.pattern.permute.xlu0 0
        %526 = vperm.xlu0 %525, %v286
        %v527 = vpop.permute.xlu0 %526
        %530 = vset.pattern.permute.xlu0 0
        %531 = vperm.xlu0 %530, %v287
        %v532 = vpop.permute.xlu0 %531
        %535 = vset.pattern.permute.xlu0 0
        %536 = vperm.xlu0 %535, %v288
        %v537 = vpop.permute.xlu0 %536
        %540 = vset.pattern.permute.xlu0 0
        %541 = vperm.xlu0 %540, %v289
        %v542 = vpop.permute.xlu0 %541
        %545 = vset.pattern.permute.xlu0 0
        %546 = vperm.xlu0 %545, %v290
        %v547 = vpop.permute.xlu0 %546
        %v549 = vadd.f32 %v493, %v512
        %v550 = vadd.f32 %v494, %v512
        %v551 = vadd.f32 %v495, %v517
        %v552 = vadd.f32 %v496, %v517
        %v553 = vadd.f32 %v497, %v522
        %v554 = vadd.f32 %v498, %v522
        %v555 = vadd.f32 %v499, %v527
        %v556 = vadd.f32 %v500, %v527
        %v557 = vadd.f32 %v501, %v532
        %v558 = vadd.f32 %v502, %v532
        %v559 = vadd.f32 %v503, %v537
        %v560 = vadd.f32 %v504, %v537
        %v561 = vadd.f32 %v505, %v542
        %v562 = vadd.f32 %v506, %v542
        %v563 = vadd.f32 %v507, %v547
        %v564 = vadd.f32 %v508, %v547
        %vm565 = vcmp.ge.f32.partialorder %v549, 0.0
        %vm566 = vcmp.ge.f32.partialorder %v550, 0.0
        %vm567 = vcmp.ge.f32.partialorder %v551, 0.0
        %vm568 = vcmp.ge.f32.partialorder %v552, 0.0
        %vm569 = vcmp.ge.f32.partialorder %v553, 0.0
        %vm570 = vcmp.ge.f32.partialorder %v554, 0.0
        %vm571 = vcmp.ge.f32.partialorder %v555, 0.0
        %vm572 = vcmp.ge.f32.partialorder %v556, 0.0
        %vm573 = vcmp.ge.f32.partialorder %v557, 0.0
        %vm574 = vcmp.ge.f32.partialorder %v558, 0.0
        %vm575 = vcmp.ge.f32.partialorder %v559, 0.0
        %vm576 = vcmp.ge.f32.partialorder %v560, 0.0
        %vm577 = vcmp.ge.f32.partialorder %v561, 0.0
        %vm578 = vcmp.ge.f32.partialorder %v562, 0.0
        %vm579 = vcmp.ge.f32.partialorder %v563, 0.0
        %vm580 = vcmp.ge.f32.partialorder %v564, 0.0
        %v581 = vmul.f32 %v549, 0.01
        %v582 = vmul.f32 %v550, 0.01
        %v583 = vmul.f32 %v551, 0.01
        %v584 = vmul.f32 %v552, 0.01
        %v585 = vmul.f32 %v553, 0.01
        %v586 = vmul.f32 %v554, 0.01
        %v587 = vmul.f32 %v555, 0.01
        %v588 = vmul.f32 %v556, 0.01
        %v589 = vmul.f32 %v557, 0.01
        %v590 = vmul.f32 %v558, 0.01
        %v591 = vmul.f32 %v559, 0.01
        %v592 = vmul.f32 %v560, 0.01
        %v593 = vmul.f32 %v561, 0.01
        %v594 = vmul.f32 %v562, 0.01
        %v595 = vmul.f32 %v563, 0.01
        %v596 = vmul.f32 %v564, 0.01
        %v597 = vsel %vm565, %v549, %v581
        %v598 = vsel %vm566, %v550, %v582
        %v599 = vsel %vm567, %v551, %v583
        %v600 = vsel %vm568, %v552, %v584
        %v601 = vsel %vm569, %v553, %v585
        %v602 = vsel %vm570, %v554, %v586
        %v603 = vsel %vm571, %v555, %v587
        %v604 = vsel %vm572, %v556, %v588
        %v605 = vsel %vm573, %v557, %v589
        %v606 = vsel %vm574, %v558, %v590
        %v607 = vsel %vm575, %v559, %v591
        %v608 = vsel %vm576, %v560, %v592
        %v609 = vsel %vm577, %v561, %v593
        %v610 = vsel %vm578, %v562, %v594
        %v611 = vsel %vm579, %v563, %v595
        %v612 = vsel %vm580, %v564, %v596
        %v613 = vsel %vm298, 1, 0
        %v614 = vsel %vm299, 1, 0
        %vm615 = vcmp.eq.s32.totalorder %v613, 1
        %vm616 = vcmp.eq.s32.totalorder %v614, 1
        %v617 = vsel %vm615, %v597, 0.0
        %v618 = vsel %vm616, %v598, 0.0
        %v619 = vsel %vm615, %v599, 0.0
        %v620 = vsel %vm616, %v600, 0.0
        %v621 = vsel %vm615, %v601, 0.0
        %v622 = vsel %vm616, %v602, 0.0
        %v623 = vsel %vm615, %v603, 0.0
        %v624 = vsel %vm616, %v604, 0.0
        %v625 = vsel %vm615, %v605, 0.0
        %v626 = vsel %vm616, %v606, 0.0
        %v627 = vsel %vm615, %v607, 0.0
        %v628 = vsel %vm616, %v608, 0.0
        %v629 = vsel %vm615, %v609, 0.0
        %v630 = vsel %vm616, %v610, 0.0
        %v631 = vsel %vm615, %v611, 0.0
        %v632 = vsel %vm616, %v612, 0.0
        %v633 = vpack.c.bf16 %v618, %v617
        %v634 = vpack.c.bf16 %v620, %v619
        %v635 = vpack.c.bf16 %v622, %v621
        %v636 = vpack.c.bf16 %v624, %v623
        %v637 = vpack.c.bf16 %v626, %v625
        %v638 = vpack.c.bf16 %v628, %v627
        %v639 = vpack.c.bf16 %v630, %v629
        %v640 = vpack.c.bf16 %v632, %v631
        %641 = vst [vmem:[%s263 + $0x8] sm:$0xff] %v633
        %642 = vst [vmem:[%s263 + $0x10] sm:$0xff] %v634
        %643 = vst [vmem:[%s263 + $0x18] sm:$0xff] %v635
        %644 = vst [vmem:[%s263 + $0x20] sm:$0xff] %v636
        %645 = vst [vmem:[%s263 + $0x28] sm:$0xff] %v637
        %646 = vst [vmem:[%s263 + $0x30] sm:$0xff] %v638
        %647 = vst [vmem:[%s263 + $0x38] sm:$0xff] %v639
        %648 = vst [vmem:[%s263 + $0x40] sm:$0xff] %v640
        %s649 = sand.u32 %s112, 1
        %s650 = sand.u32 %s112, 1
        %s651 = smul.addr %s650, 80
        %s652 = scalar_lea.vmem [#allocation3], %s651
        // Predicated region
        $region75: #{temporal_block_forward.5} parent=69 // pred_check
          %p653 = pneg %p122
        $region76: #{temporal_block_forward.5} parent=69 // pred_check_branch
          %655 = sbr.rel (%p653) target = $region78
        $region77: #{temporal_block_forward.5} parent=69 // pred_region
          %s656 = smul.u32 2, %s15
          %s657 = smul.addr %s656, 4
          %s658 = scalar_lea.vmem %s4, %s657
          // Predicated region
          $region79: #{temporal_block_forward.5} parent=77 // pred_check
            _
          $region80: #{temporal_block_forward.5} parent=77 // pred_check_branch
            %660 = sbr.rel (0) target = $region82
          $region81: #{temporal_block_forward.5} parent=77 // pred_region
            // Predicated region
            $region83: #{temporal_block_forward.5} parent=81 // pred_check
              _
            $region84: #{temporal_block_forward.5} parent=81 // pred_check_branch
              %662 = sbr.rel (0) target = $region86
            $region85: #{temporal_block_forward.5} parent=81 // pred_region
              // Predicated region
              $region98: #{temporal_block_forward.5} parent=85 // pred_check
                _
              $region99: #{temporal_block_forward.5} parent=85 // pred_check_branch
                %696 = sbr.rel (0) target = $region101
              $region100: #{temporal_block_forward.5} parent=85 // pred_region
                loop: start=0, step=1, limit=1
                $region102: #{temporal_block_forward.5} parent=100 // loop_pre_header
                  _
                $region103: #{temporal_block_forward.5} parent=100 // loop_header
                  %s698 = sphi 0, %s702
                  %p699 = scmp.ge.s32.totalorder %s698, 1
                  %s703 = sphi %s652, %s652
                  %s704 = sphi %s658, %s658
                $region104: #{temporal_block_forward.5} parent=100 // loop_header_branch
                  %701 = sbr.rel (%p699) target = $region108
                $region105: #{temporal_block_forward.5} parent=100 // loop_body
                  %v705 = vld [vmem:[%s703] sm:$0xff]
                  %706 = vst [vmem:[%s704] sm:$0xff] %v705
                  %v707 = vld [vmem:[%s703 + $0x8] sm:$0xff]
                  %708 = vst [vmem:[%s704 + $0x10] sm:$0xff] %v707
                  %v709 = vld [vmem:[%s703 + $0x10] sm:$0xff]
                  %710 = vst [vmem:[%s704 + $0x20] sm:$0xff] %v709
                  %v711 = vld [vmem:[%s703 + $0x18] sm:$0xff]
                  %712 = vst [vmem:[%s704 + $0x30] sm:$0xff] %v711
                  %v713 = vld [vmem:[%s703 + $0x20] sm:$0xff]
                  %714 = vst [vmem:[%s704 + $0x40] sm:$0xff] %v713
                  %v715 = vld [vmem:[%s703 + $0x28] sm:$0xff]
                  %716 = vst [vmem:[%s704 + $0x50] sm:$0xff] %v715
                  %v717 = vld [vmem:[%s703 + $0x30] sm:$0xff]
                  %718 = vst [vmem:[%s704 + $0x60] sm:$0xff] %v717
                  %v719 = vld [vmem:[%s703 + $0x38] sm:$0xff]
                  %720 = vst [vmem:[%s704 + $0x70] sm:$0xff] %v719
                  %v721 = vld [vmem:[%s703 + $0x40] sm:$0xff]
                  %722 = vst [vmem:[%s704 + $0x80] sm:$0xff] %v721
                  %v723 = vld [vmem:[%s703 + $0x48] sm:$0xff]
                  %724 = vst [vmem:[%s704 + $0x90] sm:$0xff] %v723
                $region106: #{temporal_block_forward.5} parent=100 // loop_footer
                  %s702 = sadd.s32 1, %s698
                $region107: #{temporal_block_forward.5} parent=100 // loop_footer_branch
                  %697 = sbr.rel target = $region103
                $region108: #{temporal_block_forward.5} parent=100 // loop_exit
                  _
              $region101: #{temporal_block_forward.5} parent=85 // pred_fallthru
                _
              // Predicated region
              $region109: #{temporal_block_forward.5} parent=85 // pred_check
                _
              $region110: #{temporal_block_forward.5} parent=85 // pred_check_branch
                %726 = sbr.rel target = $region112
              $region111: #{temporal_block_forward.5} parent=85 // pred_region
                _
              $region112: #{temporal_block_forward.5} parent=85 // pred_fallthru
                _
            $region86: #{temporal_block_forward.5} parent=81 // pred_fallthru
              _
            // Predicated region
            $region87: #{temporal_block_forward.5} parent=81 // pred_check
              _
            $region88: #{temporal_block_forward.5} parent=81 // pred_check_branch
              %664 = sbr.rel target = $region90
            $region89: #{temporal_block_forward.5} parent=81 // pred_region
              %s666 = ssub.s32 256, 1
              loop: start=0, step=1, limit=1
              $region91: #{temporal_block_forward.5} parent=89 // loop_pre_header
                _
              $region92: #{temporal_block_forward.5} parent=89 // loop_header
                %s668 = sphi 0, %s672
                %p669 = scmp.ge.s32.totalorder %s668, 1
                %s673 = sphi %s652, %s652
                %s674 = sphi %s658, %s658
              $region93: #{temporal_block_forward.5} parent=89 // loop_header_branch
                %671 = sbr.rel (%p669) target = $region97
              $region94: #{temporal_block_forward.5} parent=89 // loop_body
                %v675 = vld [vmem:[%s673] sm:%s666]
                %676 = vst [vmem:[%s674] sm:%s666] %v675
                %v677 = vld [vmem:[%s673 + $0x8] sm:%s666]
                %678 = vst [vmem:[%s674 + $0x10] sm:%s666] %v677
                %v679 = vld [vmem:[%s673 + $0x10] sm:%s666]
                %680 = vst [vmem:[%s674 + $0x20] sm:%s666] %v679
                %v681 = vld [vmem:[%s673 + $0x18] sm:%s666]
                %682 = vst [vmem:[%s674 + $0x30] sm:%s666] %v681
                %v683 = vld [vmem:[%s673 + $0x20] sm:%s666]
                %684 = vst [vmem:[%s674 + $0x40] sm:%s666] %v683
                %v685 = vld [vmem:[%s673 + $0x28] sm:%s666]
                %686 = vst [vmem:[%s674 + $0x50] sm:%s666] %v685
                %v687 = vld [vmem:[%s673 + $0x30] sm:%s666]
                %688 = vst [vmem:[%s674 + $0x60] sm:%s666] %v687
                %v689 = vld [vmem:[%s673 + $0x38] sm:%s666]
                %690 = vst [vmem:[%s674 + $0x70] sm:%s666] %v689
                %v691 = vld [vmem:[%s673 + $0x40] sm:%s666]
                %692 = vst [vmem:[%s674 + $0x80] sm:%s666] %v691
                %v693 = vld [vmem:[%s673 + $0x48] sm:%s666]
                %694 = vst [vmem:[%s674 + $0x90] sm:%s666] %v693
              $region95: #{temporal_block_forward.5} parent=89 // loop_footer
                %s672 = sadd.s32 1, %s668
              $region96: #{temporal_block_forward.5} parent=89 // loop_footer_branch
                %667 = sbr.rel target = $region92
              $region97: #{temporal_block_forward.5} parent=89 // loop_exit
                _
            $region90: #{temporal_block_forward.5} parent=81 // pred_fallthru
              _
          $region82: #{temporal_block_forward.5} parent=77 // pred_fallthru
            _
          %727 = vnop
        $region78: #{temporal_block_forward.5} parent=69 // pred_fallthru
          _
      $region70: #{temporal_block_forward.5} parent=5 // pred_fallthru
        _
      %p728 = scmp.le.s32.totalorder 2, %s10
      // Predicated region
      $region113: #{temporal_block_forward.5} parent=5 // pred_check
        %p729 = pneg %p728
      $region114: #{temporal_block_forward.5} parent=5 // pred_check_branch
        %731 = sbr.rel (%p729) target = $region116
      $region115: #{temporal_block_forward.5} parent=5 // pred_region
        %s732 = ssub.s32 %s10, 2
        // Predicated region
        $region117: #{temporal_block_forward.5} parent=115 // pred_check
          %p733 = pneg %p128
        $region118: #{temporal_block_forward.5} parent=115 // pred_check_branch
          %735 = sbr.rel (%p733) target = $region120
        $region119: #{temporal_block_forward.5} parent=115 // pred_region
          %s736 = sand.u32 %s113, 1
          %s737 = sand.u32 %s113, 1
          %s738 = smul.addr %s737, 80
          %s739 = scalar_lea.vmem [#allocation3], %s738
        $region120: #{temporal_block_forward.5} parent=115 // pred_fallthru
          _
      $region116: #{temporal_block_forward.5} parent=5 // pred_fallthru
        _
    $region6: #{temporal_block_forward.5} parent=1 // loop_footer
      %s14 = sadd.s32 1, %s10
    $region7: #{temporal_block_forward.5} parent=1 // loop_footer_branch
      %9 = sbr.rel target = $region3
    $region8: #{temporal_block_forward.5} parent=1 // loop_exit
      _

</llo_original>
